<compile_context>
chip_gen: v7x
topology: tpu7x:2x2x1
jax: 0.10.0
libtpu: 0.0.40
codegen_flags: <defaults>
</compile_context>

<pallas_src>
import jax
import jax.numpy as jnp
from jax.experimental import pallas as pl
from jax.experimental.pallas import tpu as pltpu


def base_ranker_kernel(user_ref, item_ctr_ref, txt_ref, behav_ctr_ref, mask_ref,
                       w1_ref, b1_ref, w2_ref, b2_ref, gamma_ref, beta_ref,
                       out_ref):
    """One batch tile.

    user_ref      (TB, D)          bf16   item_ctr_ref  (TB, D)     bf16
    txt_ref       (TB*(L+1), H)    bf16   behav_ctr_ref (TB, L, D)  bf16
    mask_ref      (TB, L)          bf16
    w1 (H, HID) bf16, b1 (1, HID) f32, w2 (HID, D) bf16, b2 (1, D) f32
    gamma/beta (1, D) f32
    out_ref       (TB, 5*D)        f32
    """
    TB, L, D = behav_ctr_ref.shape
    eps = 1e-5

    # --- lm_projection (MLP + LayerNorm) over the fused (TB*(L+1), H) slab ---
    x = txt_ref[...]                                                          # bf16
    h = jnp.dot(x, w1_ref[...], preferred_element_type=jnp.float32) + b1_ref[...]
    h = jnp.maximum(h, 0.0)                                                   # ReLU (f32)
    y = jnp.dot(h.astype(w2_ref.dtype), w2_ref[...],
                preferred_element_type=jnp.float32) + b2_ref[...]             # (TB*(L+1), D) f32

    # LayerNorm(D) in f32.
    mu = jnp.mean(y, axis=-1, keepdims=True)
    var = jnp.mean((y - mu) ** 2, axis=-1, keepdims=True)
    proj = (y - mu) * jax.lax.rsqrt(var + eps) * gamma_ref[...] + beta_ref[...]

    # Per batch row the slab layout is [item_row, behaviour rows...]; reshape
    # is a pure row-major split of the leading (sublane) dim.
    proj3 = proj.reshape(TB, L + 1, D)
    item_txt_proj = proj3[:, 0, :]                                            # (TB, D)

    # --- masked mean pooling (seq_pooling_layer, length clamped to >= 1) ---
    mask = mask_ref[...].astype(jnp.float32)                                  # (TB, L)
    length = jnp.sum(mask, axis=-1, keepdims=True)                            # (TB, 1)
    inv_len = 1.0 / jnp.maximum(length, 1.0)                                  # exact divide
    w_beh = (mask * inv_len)[:, :, None]                                      # (TB, L, 1)

    # Two separate weighted reductions (no (TB, L, 2D) lane concat / copy).
    pooled_ctr = jnp.sum(behav_ctr_ref[...].astype(jnp.float32) * w_beh, axis=1)
    # Pool the projected text directly on the (TB, L+1, D) slab with weight 0
    # at the item position -> no (TB, L, D) slice materialization either.
    w_txt = jnp.concatenate([jnp.zeros_like(inv_len), mask * inv_len], axis=-1)
    pooled_txt = jnp.sum(proj3 * w_txt[:, :, None], axis=1)                   # (TB, D)

    # --- single lane-dense store of the final concat ---
    out_ref[...] = jnp.concatenate(
        [user_ref[...].astype(jnp.float32),
         item_ctr_ref[...].astype(jnp.float32),
         item_txt_proj, pooled_ctr, pooled_txt], axis=-1)                     # (TB, 5D)


def _vmem_capacity_bytes(default=128 * 1024 * 1024):
    try:
        return int(pltpu.get_tpu_info().vmem_capacity_bytes)
    except Exception:
        return default


def _pick_batch_tile(B, L, D, H, HID, vmem_cap):
    """Largest divisor of B (multiple of 8) whose double-buffered working set
    fits ~half of this generation's VMEM; prefers an even grid length."""
    bf16, f32 = 2, 4
    per_row = (2 * ((L + 1) * H * bf16 + L * D * bf16 + 2 * D * bf16
                    + L * bf16 + 5 * D * f32)                       # streamed, 2-buffered
               + (L + 1) * (HID + 2 * D) * f32 + L * D * f32)       # f32 intermediates
    weight_bytes = 2 * ((H * HID + HID * D) * bf16 + (2 * HID + 6 * D) * f32)
    budget = int(0.5 * vmem_cap) - weight_bytes
    cap = max(8, min(1024, budget // max(per_row, 1)))
    cap = (cap // 8) * 8
    divisors = [t for t in range(8, min(B, cap) + 1, 8) if B % t == 0]
    assert divisors, "batch must be a multiple of 8 (pad the batch) for this kernel"
    even = [t for t in divisors if (B // t) % 2 == 0 or B // t == 1]
    return max(even) if even else max(divisors)


def _vmem_limit_bytes(TB, L, D, H, HID, vmem_cap):
    bf16, f32 = 2, 4
    rows = TB * (L + 1)
    est = (2 * (rows * H * bf16 + TB * L * D * bf16 + 2 * TB * D * bf16
                + TB * L * bf16 + TB * 5 * D * f32)
           + 2 * ((H * HID + HID * D) * bf16 + (2 * HID + 6 * D) * f32)
           + rows * (HID + 2 * D) * f32 + TB * L * D * f32 + 8 * TB * 5 * D * f32)
    return int(min(0.8 * vmem_cap, max(32 * 1024 * 1024, 3 * est)))


def base_ranker_forward(user_emb, item_ctr_emb, txt_slab, behav_ctr_emb, mask,
                        w1, b1, w2, b2, gamma, beta, *,
                        batch_tile=None, txt_buffer_count=2):
    """txt_slab: fused bf16 text rows, shape (B*(L+1), H); per batch row the
    layout is [item_text_row, behaviour_text_row_0, ..., behaviour_text_row_{L-1}]."""
    B, L, D = behav_ctr_emb.shape
    H = txt_slab.shape[-1]
    HID = w1.shape[-1]
    assert txt_slab.shape[0] == B * (L + 1)

    vmem_cap = _vmem_capacity_bytes()
    if batch_tile is None:
        batch_tile = _pick_batch_tile(B, L, D, H, HID, vmem_cap)
    assert B % batch_tile == 0 and batch_tile % 8 == 0, \
        "batch_tile must divide B and be a multiple of 8"
    grid = (B // batch_tile,)
    vmem_limit = _vmem_limit_bytes(batch_tile, L, D, H, HID, vmem_cap)

    def batch2(feat):
        return pl.BlockSpec((batch_tile, feat), lambda i: (i, 0))

    def full(shape):
        nd = len(shape)
        return pl.BlockSpec(shape, lambda i, nd=nd: (0,) * nd)

    txt_block = (batch_tile * (L + 1), H)
    if txt_buffer_count != 2:
        # v5e (lowest HBM BW, 128 MiB VMEM): 3-deep buffering on the dominant stream.
        txt_spec = pl.BlockSpec(txt_block, lambda i: (i, 0),
                                pipeline_mode=pl.Buffered(txt_buffer_count))
    else:
        txt_spec = pl.BlockSpec(txt_block, lambda i: (i, 0))

    return pl.pallas_call(
        base_ranker_kernel,
        out_shape=jax.ShapeDtypeStruct((B, 5 * D), jnp.float32),
        grid=grid,
        in_specs=[batch2(D),                                   # user_emb       (B, D)
                  batch2(D),                                   # item_ctr_emb   (B, D)
                  txt_spec,                                    # txt_slab       (B*(L+1), H)
                  pl.BlockSpec((batch_tile, L, D), lambda i: (i, 0, 0)),  # behav_ctr
                  batch2(L),                                   # mask           (B, L)
                  full(w1.shape), full(b1.shape),
                  full(w2.shape), full(b2.shape),
                  full(gamma.shape), full(beta.shape)],
        out_specs=pl.BlockSpec((batch_tile, 5 * D), lambda i: (i, 0)),
        compiler_params=pltpu.CompilerParams(
            dimension_semantics=("parallel",),                 # megacore sharding on v7x
            vmem_limit_bytes=vmem_limit),
    )(user_emb, item_ctr_emb, txt_slab, behav_ctr_emb, mask,
      w1, b1, w2, b2, gamma, beta)


if __name__ == "__main__":
    # batch, behaviour seq len, embed_dim, text dim, MLP hidden (small demo shapes;
    # L = 7 so each batch row owns L+1 = 8 contiguous slab rows = one sublane tile).
    B, L, D, H, HID = 64, 7, 32, 64, 64
    BT = 16                                  # grid = (4,), fused matmul M = 128 rows
    n_users, n_items = 50, 40

    key = jax.random.PRNGKey(0)
    ks = jax.random.split(key, 8)

    # --- parameters (MyEmbeddings + frozen text_embedding + lm_projection) ---
    user_table = jax.random.normal(ks[0], (n_users, D), jnp.float32) * 0.1
    item_table = jax.random.normal(ks[1], (n_items, D), jnp.float32) * 0.1
    item_table = item_table.at[0].set(0.0)                     # padding_idx=0
    text_table = jax.random.normal(ks[2], (n_items, H), jnp.float32) * 0.1
    text_table = text_table.at[0].set(0.0)                     # padding_idx=0

    w1 = jax.random.normal(ks[3], (H, HID), jnp.float32) * (2.0 / (H + HID)) ** 0.5
    b1 = jnp.zeros((1, HID), jnp.float32)
    w2 = jax.random.normal(ks[4], (HID, D), jnp.float32) * (2.0 / (HID + D)) ** 0.5
    b2 = jnp.zeros((1, D), jnp.float32)
    gamma = jnp.ones((1, D), jnp.float32)
    beta = jnp.zeros((1, D), jnp.float32)

    # bf16 matmul operands / data-movement tensors; f32 accumulation in kernel.
    # TODO(synk): bf16 casts validated against a mirroring JAX reference only;
    # confirm ranking-score parity against the fp32 torch model before shipping.
    text_table_bf16 = text_table.astype(jnp.bfloat16)
    w1_b = w1.astype(jnp.bfloat16)
    w2_b = w2.astype(jnp.bfloat16)

    # --- deterministic example batch ---
    user_id = jax.random.randint(ks[5], (B,), 1, n_users)
    item_id = jax.random.randint(ks[6], (B,), 1, n_items)
    in_item_id = jax.random.randint(ks[7], (B, L), 0, n_items)  # 0 == padding

    # --- glue: embedding gathers + fused text slab (hoisted out of the kernel) ---
    user_emb = user_table[user_id].astype(jnp.bfloat16)           # (B, D)
    item_ctr_emb = item_table[item_id].astype(jnp.bfloat16)       # (B, D)
    behav_ctr_emb = item_table[in_item_id].astype(jnp.bfloat16)   # (B, L, D)
    item_txt_emb = text_table_bf16[item_id]                       # (B, H)
    behav_txt_emb = text_table_bf16[in_item_id]                   # (B, L, H)
    txt_slab = jnp.concatenate([item_txt_emb[:, None, :], behav_txt_emb],
                               axis=1).reshape(B * (L + 1), H)    # (B*(L+1), H)
    mask = (in_item_id > 0).astype(jnp.bfloat16)                  # (B, L)

    out = base_ranker_forward(user_emb, item_ctr_emb, txt_slab, behav_ctr_emb,
                              mask, w1_b, b1, w2_b, b2, gamma, beta,
                              batch_tile=BT)
    out = jax.block_until_ready(out)
    assert out.shape == (B, 5 * D)

    # --- plain-JAX reference (mirrors the bf16 casts; LN/pooling exact f32) ---
    def proj_ref(x_bf16):
        h = jnp.dot(x_bf16, w1_b, preferred_element_type=jnp.float32) + b1
        h = jnp.maximum(h, 0.0)
        y = jnp.dot(h.astype(jnp.bfloat16), w2_b, preferred_element_type=jnp.float32) + b2
        mu = y.mean(-1, keepdims=True)
        var = ((y - mu) ** 2).mean(-1, keepdims=True)
        return (y - mu) * jax.lax.rsqrt(var + 1e-5) * gamma + beta

    mask_f = mask.astype(jnp.float32)
    item_txt_proj_r = proj_ref(item_txt_emb)                      # (B, D)
    behav_txt_proj_r = proj_ref(behav_txt_emb)                    # (B, L, D)
    length_r = jnp.maximum(mask_f.sum(-1, keepdims=True), 1.0)
    pooled_ctr_r = (behav_ctr_emb.astype(jnp.float32) * mask_f[..., None]).sum(1) / length_r
    pooled_txt_r = (behav_txt_proj_r * mask_f[..., None]).sum(1) / length_r
    ref = jnp.concatenate(
        [user_emb.astype(jnp.float32), item_ctr_emb.astype(jnp.float32),
         item_txt_proj_r, pooled_ctr_r, pooled_txt_r], axis=-1)
    ref = jax.block_until_ready(ref)

    err = float(jnp.max(jnp.abs(out - ref)))
    assert jnp.allclose(out, ref, atol=1e-4, rtol=1e-4), f"max abs err = {err}"

    print("KERNEL_OK")
</pallas_src>

<mosaic_0001>
module attributes {stable_mosaic.version = 11 : i64} {
  func.func @base_ranker_kernel(%arg0: i32, %arg1: memref<16x32xbf16, #tpu.memory_space<vmem>>, %arg2: memref<16x32xbf16, #tpu.memory_space<vmem>>, %arg3: memref<128x64xbf16, #tpu.memory_space<vmem>>, %arg4: memref<16x7x32xbf16, #tpu.memory_space<vmem>>, %arg5: memref<16x7xbf16, #tpu.memory_space<vmem>>, %arg6: memref<64x64xbf16, #tpu.memory_space<vmem>>, %arg7: memref<1x64xf32, #tpu.memory_space<vmem>>, %arg8: memref<64x32xbf16, #tpu.memory_space<vmem>>, %arg9: memref<1x32xf32, #tpu.memory_space<vmem>>, %arg10: memref<1x32xf32, #tpu.memory_space<vmem>>, %arg11: memref<1x32xf32, #tpu.memory_space<vmem>>, %arg12: memref<16x160xf32, #tpu.memory_space<vmem>>) attributes {dimension_semantics = [#tpu.dimension_semantics<parallel>], iteration_bounds = array<i64: 4>, scalar_prefetch = 0 : i64, scratch_operands = 0 : i64, tpu.core_type = #tpu.core_type<tc>, window_params = [{transform_indices = @transform_0, window_bounds = array<i64: 16, 32>}, {transform_indices = @transform_1, window_bounds = array<i64: 16, 32>}, {transform_indices = @transform_2, window_bounds = array<i64: 128, 64>}, {transform_indices = @transform_3, window_bounds = array<i64: 16, 7, 32>}, {transform_indices = @transform_4, window_bounds = array<i64: 16, 7>}, {pipeline_mode = #tpu.pipeline_mode<synchronous>, transform_indices = @transform_5, window_bounds = array<i64: 64, 64>}, {pipeline_mode = #tpu.pipeline_mode<synchronous>, transform_indices = @transform_6, window_bounds = array<i64: 1, 64>}, {pipeline_mode = #tpu.pipeline_mode<synchronous>, transform_indices = @transform_7, window_bounds = array<i64: 64, 32>}, {pipeline_mode = #tpu.pipeline_mode<synchronous>, transform_indices = @transform_8, window_bounds = array<i64: 1, 32>}, {pipeline_mode = #tpu.pipeline_mode<synchronous>, transform_indices = @transform_9, window_bounds = array<i64: 1, 32>}, {pipeline_mode = #tpu.pipeline_mode<synchronous>, transform_indices = @transform_10, window_bounds = array<i64: 1, 32>}, {transform_indices = @transform_11, window_bounds = array<i64: 16, 160>}]} {
    %c0 = arith.constant 0 : index
    %c0_0 = arith.constant 0 : index
    %0 = vector.load %arg3[%c0, %c0_0] : memref<128x64xbf16, #tpu.memory_space<vmem>>, vector<128x64xbf16>
    %c0_1 = arith.constant 0 : index
    %c0_2 = arith.constant 0 : index
    %1 = vector.load %arg6[%c0_1, %c0_2] : memref<64x64xbf16, #tpu.memory_space<vmem>>, vector<64x64xbf16>
    %cst = arith.constant dense<0.000000e+00> : vector<128x64xf32>
    %2 = tpu.matmul %0, %1, %cst {dimension_numbers = #tpu.dot_dimension_numbers<[1], [0], [0], [1], [0, 0, 1, 1], [], []>} : vector<128x64xbf16>, vector<64x64xbf16>, vector<128x64xf32> -> vector<128x64xf32>
    %c0_3 = arith.constant 0 : index
    %c0_4 = arith.constant 0 : index
    %3 = vector.load %arg7[%c0_3, %c0_4] : memref<1x64xf32, #tpu.memory_space<vmem>>, vector<1x64xf32>
    %4 = vector.broadcast %3 : vector<1x64xf32> to vector<128x64xf32>
    %5 = arith.addf %2, %4 : vector<128x64xf32>
    %cst_5 = arith.constant 0.000000e+00 : f32
    %6 = vector.broadcast %cst_5 : f32 to vector<128x64xf32>
    %7 = arith.maximumf %5, %6 : vector<128x64xf32>
    %8 = arith.truncf %7 : vector<128x64xf32> to vector<128x64xbf16>
    %c0_6 = arith.constant 0 : index
    %c0_7 = arith.constant 0 : index
    %9 = vector.load %arg8[%c0_6, %c0_7] : memref<64x32xbf16, #tpu.memory_space<vmem>>, vector<64x32xbf16>
    %cst_8 = arith.constant dense<0.000000e+00> : vector<128x32xf32>
    %10 = tpu.matmul %8, %9, %cst_8 {dimension_numbers = #tpu.dot_dimension_numbers<[1], [0], [0], [1], [0, 0, 1, 1], [], []>} : vector<128x64xbf16>, vector<64x32xbf16>, vector<128x32xf32> -> vector<128x32xf32>
    %c0_9 = arith.constant 0 : index
    %c0_10 = arith.constant 0 : index
    %11 = vector.load %arg9[%c0_9, %c0_10] : memref<1x32xf32, #tpu.memory_space<vmem>>, vector<1x32xf32>
    %12 = vector.broadcast %11 : vector<1x32xf32> to vector<128x32xf32>
    %13 = arith.addf %10, %12 : vector<128x32xf32>
    %cst_11 = arith.constant dense<0.000000e+00> : vector<128xf32>
    %14 = vector.multi_reduction <add>, %13, %cst_11 [1] : vector<128x32xf32> to vector<128xf32>
    %15 = vector.shape_cast %14 : vector<128xf32> to vector<128x1xf32>
    %cst_12 = arith.constant 3.200000e+01 : f32
    %16 = vector.broadcast %cst_12 : f32 to vector<128x1xf32>
    %17 = arith.divf %15, %16 : vector<128x1xf32>
    %18 = vector.broadcast %17 : vector<128x1xf32> to vector<128x32xf32>
    %19 = arith.subf %13, %18 : vector<128x32xf32>
    %20 = arith.mulf %19, %19 : vector<128x32xf32>
    %cst_13 = arith.constant dense<0.000000e+00> : vector<128xf32>
    %21 = vector.multi_reduction <add>, %20, %cst_13 [1] : vector<128x32xf32> to vector<128xf32>
    %22 = vector.shape_cast %21 : vector<128xf32> to vector<128x1xf32>
    %cst_14 = arith.constant 3.200000e+01 : f32
    %23 = vector.broadcast %cst_14 : f32 to vector<128x1xf32>
    %24 = arith.divf %22, %23 : vector<128x1xf32>
    %25 = vector.broadcast %17 : vector<128x1xf32> to vector<128x32xf32>
    %26 = arith.subf %13, %25 : vector<128x32xf32>
    %cst_15 = arith.constant 9.99999974E-6 : f32
    %27 = vector.broadcast %cst_15 : f32 to vector<128x1xf32>
    %28 = arith.addf %24, %27 : vector<128x1xf32>
    %29 = math.rsqrt %28 : vector<128x1xf32>
    %30 = vector.broadcast %29 : vector<128x1xf32> to vector<128x32xf32>
    %31 = arith.mulf %26, %30 : vector<128x32xf32>
    %c0_16 = arith.constant 0 : index
    %c0_17 = arith.constant 0 : index
    %32 = vector.load %arg10[%c0_16, %c0_17] : memref<1x32xf32, #tpu.memory_space<vmem>>, vector<1x32xf32>
    %33 = vector.broadcast %32 : vector<1x32xf32> to vector<128x32xf32>
    %34 = arith.mulf %31, %33 : vector<128x32xf32>
    %c0_18 = arith.constant 0 : index
    %c0_19 = arith.constant 0 : index
    %35 = vector.load %arg11[%c0_18, %c0_19] : memref<1x32xf32, #tpu.memory_space<vmem>>, vector<1x32xf32>
    %36 = vector.broadcast %35 : vector<1x32xf32> to vector<128x32xf32>
    %37 = arith.addf %34, %36 : vector<128x32xf32>
    %38 = vector.shape_cast %37 : vector<128x32xf32> to vector<16x8x32xf32>
    %39 = vector.extract_strided_slice %38 {offsets = [0, 0, 0], sizes = [16, 1, 32], strides = [1, 1, 1]} : vector<16x8x32xf32> to vector<16x1x32xf32>
    %40 = vector.shape_cast %39 : vector<16x1x32xf32> to vector<16x32xf32>
    %c0_20 = arith.constant 0 : index
    %c0_21 = arith.constant 0 : index
    %41 = vector.load %arg5[%c0_20, %c0_21] : memref<16x7xbf16, #tpu.memory_space<vmem>>, vector<16x7xbf16>
    %42 = arith.extf %41 : vector<16x7xbf16> to vector<16x7xf32>
    %cst_22 = arith.constant dense<0.000000e+00> : vector<16xf32>
    %43 = vector.multi_reduction <add>, %42, %cst_22 [1] : vector<16x7xf32> to vector<16xf32>
    %44 = vector.shape_cast %43 : vector<16xf32> to vector<16x1xf32>
    %cst_23 = arith.constant 1.000000e+00 : f32
    %45 = vector.broadcast %cst_23 : f32 to vector<16x1xf32>
    %46 = arith.maximumf %44, %45 : vector<16x1xf32>
    %cst_24 = arith.constant 1.000000e+00 : f32
    %47 = vector.broadcast %cst_24 : f32 to vector<16x1xf32>
    %48 = arith.divf %47, %46 : vector<16x1xf32>
    %49 = vector.broadcast %48 : vector<16x1xf32> to vector<16x7xf32>
    %50 = arith.mulf %42, %49 : vector<16x7xf32>
    %51 = vector.shape_cast %50 : vector<16x7xf32> to vector<16x7x1xf32>
    %c0_25 = arith.constant 0 : index
    %c0_26 = arith.constant 0 : index
    %c0_27 = arith.constant 0 : index
    %52 = vector.load %arg4[%c0_25, %c0_26, %c0_27] : memref<16x7x32xbf16, #tpu.memory_space<vmem>>, vector<16x7x32xbf16>
    %53 = arith.extf %52 : vector<16x7x32xbf16> to vector<16x7x32xf32>
    %54 = vector.broadcast %51 : vector<16x7x1xf32> to vector<16x7x32xf32>
    %55 = arith.mulf %53, %54 : vector<16x7x32xf32>
    %cst_28 = arith.constant dense<0.000000e+00> : vector<16x32xf32>
    %56 = vector.multi_reduction <add>, %55, %cst_28 [1] : vector<16x7x32xf32> to vector<16x32xf32>
    %cst_29 = arith.constant 0.000000e+00 : f32
    %57 = vector.broadcast %cst_29 : f32 to vector<16x1xf32>
    %58 = vector.broadcast %48 : vector<16x1xf32> to vector<16x7xf32>
    %59 = arith.mulf %42, %58 : vector<16x7xf32>
    %60 = tpu.concatenate %57, %59 in 1 : vector<16x1xf32>, vector<16x7xf32> -> vector<16x8xf32>
    %61 = vector.shape_cast %60 : vector<16x8xf32> to vector<16x8x1xf32>
    %62 = vector.broadcast %61 : vector<16x8x1xf32> to vector<16x8x32xf32>
    %63 = arith.mulf %38, %62 : vector<16x8x32xf32>
    %cst_30 = arith.constant dense<0.000000e+00> : vector<16x32xf32>
    %64 = vector.multi_reduction <add>, %63, %cst_30 [1] : vector<16x8x32xf32> to vector<16x32xf32>
    %c0_31 = arith.constant 0 : index
    %c0_32 = arith.constant 0 : index
    %65 = vector.load %arg1[%c0_31, %c0_32] : memref<16x32xbf16, #tpu.memory_space<vmem>>, vector<16x32xbf16>
    %66 = arith.extf %65 : vector<16x32xbf16> to vector<16x32xf32>
    %c0_33 = arith.constant 0 : index
    %c0_34 = arith.constant 0 : index
    %67 = vector.load %arg2[%c0_33, %c0_34] : memref<16x32xbf16, #tpu.memory_space<vmem>>, vector<16x32xbf16>
    %68 = arith.extf %67 : vector<16x32xbf16> to vector<16x32xf32>
    %69 = tpu.concatenate %66, %68, %40, %56, %64 in 1 : vector<16x32xf32>, vector<16x32xf32>, vector<16x32xf32>, vector<16x32xf32>, vector<16x32xf32> -> vector<16x160xf32>
    %c0_35 = arith.constant 0 : index
    %c0_36 = arith.constant 0 : index
    %70 = vector.load %arg12[%c0_35, %c0_36] : memref<16x160xf32, #tpu.memory_space<vmem>>, vector<16x160xf32>
    tpu.vector_store %arg12[%c0_35, %c0_36], %69 {strides = array<i32>} : memref<16x160xf32, #tpu.memory_space<vmem>>, vector<16x160xf32>,
    return
  }
  func.func @transform_0(%arg0: i32) -> (i32, i32) {
    %c0_i32 = arith.constant 0 : i32
    %c0_i32_0 = arith.constant 0 : i32
    return %arg0, %c0_i32 : i32, i32
  }
  func.func @transform_1(%arg0: i32) -> (i32, i32) {
    %c0_i32 = arith.constant 0 : i32
    %c0_i32_0 = arith.constant 0 : i32
    return %arg0, %c0_i32 : i32, i32
  }
  func.func @transform_2(%arg0: i32) -> (i32, i32) {
    %c0_i32 = arith.constant 0 : i32
    %c0_i32_0 = arith.constant 0 : i32
    return %arg0, %c0_i32 : i32, i32
  }
  func.func @transform_3(%arg0: i32) -> (i32, i32, i32) {
    %c0_i32 = arith.constant 0 : i32
    %c0_i32_0 = arith.constant 0 : i32
    %c0_i32_1 = arith.constant 0 : i32
    return %arg0, %c0_i32, %c0_i32_0 : i32, i32, i32
  }
  func.func @transform_4(%arg0: i32) -> (i32, i32) {
    %c0_i32 = arith.constant 0 : i32
    %c0_i32_0 = arith.constant 0 : i32
    return %arg0, %c0_i32 : i32, i32
  }
  func.func @transform_5(%arg0: i32) -> (i32, i32) {
    %c0_i32 = arith.constant 0 : i32
    %c0_i32_0 = arith.constant 0 : i32
    %c0_i32_1 = arith.constant 0 : i32
    return %c0_i32, %c0_i32_0 : i32, i32
  }
  func.func @transform_6(%arg0: i32) -> (i32, i32) {
    %c0_i32 = arith.constant 0 : i32
    %c0_i32_0 = arith.constant 0 : i32
    %c0_i32_1 = arith.constant 0 : i32
    return %c0_i32, %c0_i32_0 : i32, i32
  }
  func.func @transform_7(%arg0: i32) -> (i32, i32) {
    %c0_i32 = arith.constant 0 : i32
    %c0_i32_0 = arith.constant 0 : i32
    %c0_i32_1 = arith.constant 0 : i32
    return %c0_i32, %c0_i32_0 : i32, i32
  }
  func.func @transform_8(%arg0: i32) -> (i32, i32) {
    %c0_i32 = arith.constant 0 : i32
    %c0_i32_0 = arith.constant 0 : i32
    %c0_i32_1 = arith.constant 0 : i32
    return %c0_i32, %c0_i32_0 : i32, i32
  }
  func.func @transform_9(%arg0: i32) -> (i32, i32) {
    %c0_i32 = arith.constant 0 : i32
    %c0_i32_0 = arith.constant 0 : i32
    %c0_i32_1 = arith.constant 0 : i32
    return %c0_i32, %c0_i32_0 : i32, i32
  }
  func.func @transform_10(%arg0: i32) -> (i32, i32) {
    %c0_i32 = arith.constant 0 : i32
    %c0_i32_0 = arith.constant 0 : i32
    %c0_i32_1 = arith.constant 0 : i32
    return %c0_i32, %c0_i32_0 : i32, i32
  }
  func.func @transform_11(%arg0: i32) -> (i32, i32) {
    %c0_i32 = arith.constant 0 : i32
    %c0_i32_0 = arith.constant 0 : i32
    return %arg0, %c0_i32 : i32, i32
  }
}

</mosaic_0001>

<llo_original>
// kernel: tpu_custom_call.1
$region0: #{tpu_custom_call.1}
  #allocation0 [shape = 'u32[]', space=smem, size = 0x4, offset = 0x4, fixed_abs, tag = 'smem constant byte address 0x4 - core index']
  #allocation1 [shape = 'u32[144,128]{1,0:T(1,128)}', space=vmem, size = 0x12000, scoped, tag = 'internal scratch']
  %s0 = inlined_call_operand.vmem [shape: bf16[64,32], index: 0, kind: input, shape index: {}]
  %s1 = inlined_call_operand.vmem [shape: bf16[64,32], index: 1, kind: input, shape index: {}]
  %s2 = inlined_call_operand.vmem [shape: bf16[512,64], index: 2, kind: input, shape index: {}]
  %s3 = inlined_call_operand.vmem [shape: bf16[64,7,32], index: 3, kind: input, shape index: {}]
  %s4 = inlined_call_operand.vmem [shape: bf16[64,7], index: 4, kind: input, shape index: {}]
  %s5 = inlined_call_operand.vmem [shape: bf16[64,64], index: 5, kind: input, shape index: {}]
  %s6 = inlined_call_operand.vmem [shape: f32[1,64], index: 6, kind: input, shape index: {}]
  %s7 = inlined_call_operand.vmem [shape: bf16[64,32], index: 7, kind: input, shape index: {}]
  %s8 = inlined_call_operand.vmem [shape: f32[1,32], index: 8, kind: input, shape index: {}]
  %s9 = inlined_call_operand.vmem [shape: f32[1,32], index: 9, kind: input, shape index: {}]
  %s10 = inlined_call_operand.vmem [shape: f32[1,32], index: 10, kind: input, shape index: {}]
  %s11 = inlined_call_operand.hbm [shape: f32[64,160], index: 11, kind: output, shape index: {}]
  %s12 = sld [smem:[#allocation0]]
  $region77: #{tpu_custom_call.1} parent=0
    _
  %s14 = ssub.s32 1, %s12
  %s15 = scalar_select 0, %s14, %s12
  $region1: #{tpu_custom_call.1} parent=0
    #allocation2 [shape = 'u8[32768]{0}', space=vmem, size = 0x8000, scoped, tag = 'output window, operand 0']
    #allocation3 [shape = 's32[2]{0}', space=sflag, size = 0x8, scoped, tag = 'scoped memory for tpu_custom_call.1']
    %16 = vsyncpa [#allocation3], 0
    %s17 = scalar_lea.sflag [#allocation3], 1
    %18 = vsyncpa %s17, 0
    loop: start=0, step=1, limit=6
    $region2: #{tpu_custom_call.1} parent=1 // loop_pre_header
      _
    $region3: #{tpu_custom_call.1} parent=1 // loop_header
      %s20 = sphi 0, %s24
      %p21 = scmp.ge.s32.totalorder %s20, 6
      %s30 = sphi 0, %s32
      %s33 = sphi 0, %s30
      %s34 = sphi 0, %s33
      %s50 = sphi 0, %s34
      %s56 = sphi 0, %s58
      %s59 = sphi 0, %s56
      %s60 = sphi 0, %s59
      %s76 = sphi 0, %s60
      %s82 = sphi 0, %s84
      %s85 = sphi 0, %s82
      %s86 = sphi 0, %s85
      %s102 = sphi 0, %s86
      %s108 = sphi 0, %s110
      %s111 = sphi 0, %s108
      %s112 = sphi 0, %s111
      %s128 = sphi 0, %s112
      %s134 = sphi 0, %s136
      %s137 = sphi 0, %s134
      %s138 = sphi 0, %s137
      %s154 = sphi 0, %s138
      %s158 = sphi 0, %s158
      %s160 = sphi 0, %s158
      %s161 = sphi 0, %s160
      %s175 = sphi 0, %s161
      %s179 = sphi 0, %s179
      %s181 = sphi 0, %s179
      %s182 = sphi 0, %s181
      %s196 = sphi 0, %s182
      %s200 = sphi 0, %s200
      %s202 = sphi 0, %s200
      %s203 = sphi 0, %s202
      %s217 = sphi 0, %s203
      %s221 = sphi 0, %s221
      %s223 = sphi 0, %s221
      %s224 = sphi 0, %s223
      %s238 = sphi 0, %s224
      %s242 = sphi 0, %s242
      %s244 = sphi 0, %s242
      %s245 = sphi 0, %s244
      %s259 = sphi 0, %s245
      %s263 = sphi 0, %s263
      %s265 = sphi 0, %s263
      %s266 = sphi 0, %s265
      %s280 = sphi 0, %s266
      %s286 = sphi 0, %s288
      %s289 = sphi 0, %s286
      %s290 = sphi 0, %s289
      %s306 = sphi 0, %s290
    $region4: #{tpu_custom_call.1} parent=1 // loop_header_branch
      %23 = sbr.rel (%p21) target = $region8
    $region5: #{tpu_custom_call.1} parent=1 // loop_body
      %s25 = ssub.s32 %s20, 1
      %s26 = ssub.s32 %s20, 2
      %s27 = sadd.s32 %s20, 1
      %s28 = ssub.s32 %s20, %s27
      %p29 = scmp.eq.s32.totalorder %s28, 0
      %s31 = sadd.s32 %s30, 1
      %s32 = scalar_select %p29, %s30, %s31
      %p35 = pneg %p29
      %p36 = scmp.eq.s32.totalorder %s20, 3
      %p37 = por %p35, %p36
      %p38 = scmp.ne.s32.totalorder %s30, %s33
      %p39 = scmp.eq.s32.totalorder %s20, 0
      %p40 = por %p38, %p39
      %p41 = scmp.ne.s32.totalorder %s30, %s33
      %p42 = scmp.eq.s32.totalorder %s25, 3
      %p43 = por %p41, %p42
      %p44 = scmp.ne.s32.totalorder %s33, %s34
      %p45 = scmp.eq.s32.totalorder %s25, 0
      %p46 = por %p44, %p45
      %p47 = scmp.ne.s32.totalorder %s33, %s34
      %p48 = scmp.eq.s32.totalorder %s26, 3
      %p49 = por %p47, %p48
      %p51 = scmp.ne.s32.totalorder %s34, %s50
      %p52 = scmp.eq.s32.totalorder %s26, 0
      %p53 = por %p51, %p52
      %s54 = ssub.s32 %s20, %s27
      %p55 = scmp.eq.s32.totalorder %s54, 0
      %s57 = sadd.s32 %s56, 1
      %s58 = scalar_select %p55, %s56, %s57
      %p61 = pneg %p55
      %p62 = scmp.eq.s32.totalorder %s20, 3
      %p63 = por %p61, %p62
      %p64 = scmp.ne.s32.totalorder %s56, %s59
      %p65 = scmp.eq.s32.totalorder %s20, 0
      %p66 = por %p64, %p65
      %p67 = scmp.ne.s32.totalorder %s56, %s59
      %p68 = scmp.eq.s32.totalorder %s25, 3
      %p69 = por %p67, %p68
      %p70 = scmp.ne.s32.totalorder %s59, %s60
      %p71 = scmp.eq.s32.totalorder %s25, 0
      %p72 = por %p70, %p71
      %p73 = scmp.ne.s32.totalorder %s59, %s60
      %p74 = scmp.eq.s32.totalorder %s26, 3
      %p75 = por %p73, %p74
      %p77 = scmp.ne.s32.totalorder %s60, %s76
      %p78 = scmp.eq.s32.totalorder %s26, 0
      %p79 = por %p77, %p78
      %s80 = ssub.s32 %s20, %s27
      %p81 = scmp.eq.s32.totalorder %s80, 0
      %s83 = sadd.s32 %s82, 1
      %s84 = scalar_select %p81, %s82, %s83
      %p87 = pneg %p81
      %p88 = scmp.eq.s32.totalorder %s20, 3
      %p89 = por %p87, %p88
      %p90 = scmp.ne.s32.totalorder %s82, %s85
      %p91 = scmp.eq.s32.totalorder %s20, 0
      %p92 = por %p90, %p91
      %p93 = scmp.ne.s32.totalorder %s82, %s85
      %p94 = scmp.eq.s32.totalorder %s25, 3
      %p95 = por %p93, %p94
      %p96 = scmp.ne.s32.totalorder %s85, %s86
      %p97 = scmp.eq.s32.totalorder %s25, 0
      %p98 = por %p96, %p97
      %p99 = scmp.ne.s32.totalorder %s85, %s86
      %p100 = scmp.eq.s32.totalorder %s26, 3
      %p101 = por %p99, %p100
      %p103 = scmp.ne.s32.totalorder %s86, %s102
      %p104 = scmp.eq.s32.totalorder %s26, 0
      %p105 = por %p103, %p104
      %s106 = ssub.s32 %s20, %s27
      %p107 = scmp.eq.s32.totalorder %s106, 0
      %s109 = sadd.s32 %s108, 1
      %s110 = scalar_select %p107, %s108, %s109
      %p113 = pneg %p107
      %p114 = scmp.eq.s32.totalorder %s20, 3
      %p115 = por %p113, %p114
      %p116 = scmp.ne.s32.totalorder %s108, %s111
      %p117 = scmp.eq.s32.totalorder %s20, 0
      %p118 = por %p116, %p117
      %p119 = scmp.ne.s32.totalorder %s108, %s111
      %p120 = scmp.eq.s32.totalorder %s25, 3
      %p121 = por %p119, %p120
      %p122 = scmp.ne.s32.totalorder %s111, %s112
      %p123 = scmp.eq.s32.totalorder %s25, 0
      %p124 = por %p122, %p123
      %p125 = scmp.ne.s32.totalorder %s111, %s112
      %p126 = scmp.eq.s32.totalorder %s26, 3
      %p127 = por %p125, %p126
      %p129 = scmp.ne.s32.totalorder %s112, %s128
      %p130 = scmp.eq.s32.totalorder %s26, 0
      %p131 = por %p129, %p130
      %s132 = ssub.s32 %s20, %s27
      %p133 = scmp.eq.s32.totalorder %s132, 0
      %s135 = sadd.s32 %s134, 1
      %s136 = scalar_select %p133, %s134, %s135
      %p139 = pneg %p133
      %p140 = scmp.eq.s32.totalorder %s20, 3
      %p141 = por %p139, %p140
      %p142 = scmp.ne.s32.totalorder %s134, %s137
      %p143 = scmp.eq.s32.totalorder %s20, 0
      %p144 = por %p142, %p143
      %p145 = scmp.ne.s32.totalorder %s134, %s137
      %p146 = scmp.eq.s32.totalorder %s25, 3
      %p147 = por %p145, %p146
      %p148 = scmp.ne.s32.totalorder %s137, %s138
      %p149 = scmp.eq.s32.totalorder %s25, 0
      %p150 = por %p148, %p149
      %p151 = scmp.ne.s32.totalorder %s137, %s138
      %p152 = scmp.eq.s32.totalorder %s26, 3
      %p153 = por %p151, %p152
      %p155 = scmp.ne.s32.totalorder %s138, %s154
      %p156 = scmp.eq.s32.totalorder %s26, 0
      %p157 = por %p155, %p156
      %s159 = sadd.s32 %s158, 1
      %p162 = scmp.eq.s32.totalorder %s20, 3
      %p163 = scmp.ne.s32.totalorder %s158, %s160
      %p164 = scmp.eq.s32.totalorder %s20, 0
      %p165 = por %p163, %p164
      %p166 = scmp.ne.s32.totalorder %s158, %s160
      %p167 = scmp.eq.s32.totalorder %s25, 3
      %p168 = por %p166, %p167
      %p169 = scmp.ne.s32.totalorder %s160, %s161
      %p170 = scmp.eq.s32.totalorder %s25, 0
      %p171 = por %p169, %p170
      %p172 = scmp.ne.s32.totalorder %s160, %s161
      %p173 = scmp.eq.s32.totalorder %s26, 3
      %p174 = por %p172, %p173
      %p176 = scmp.ne.s32.totalorder %s161, %s175
      %p177 = scmp.eq.s32.totalorder %s26, 0
      %p178 = por %p176, %p177
      %s180 = sadd.s32 %s179, 1
      %p183 = scmp.eq.s32.totalorder %s20, 3
      %p184 = scmp.ne.s32.totalorder %s179, %s181
      %p185 = scmp.eq.s32.totalorder %s20, 0
      %p186 = por %p184, %p185
      %p187 = scmp.ne.s32.totalorder %s179, %s181
      %p188 = scmp.eq.s32.totalorder %s25, 3
      %p189 = por %p187, %p188
      %p190 = scmp.ne.s32.totalorder %s181, %s182
      %p191 = scmp.eq.s32.totalorder %s25, 0
      %p192 = por %p190, %p191
      %p193 = scmp.ne.s32.totalorder %s181, %s182
      %p194 = scmp.eq.s32.totalorder %s26, 3
      %p195 = por %p193, %p194
      %p197 = scmp.ne.s32.totalorder %s182, %s196
      %p198 = scmp.eq.s32.totalorder %s26, 0
      %p199 = por %p197, %p198
      %s201 = sadd.s32 %s200, 1
      %p204 = scmp.eq.s32.totalorder %s20, 3
      %p205 = scmp.ne.s32.totalorder %s200, %s202
      %p206 = scmp.eq.s32.totalorder %s20, 0
      %p207 = por %p205, %p206
      %p208 = scmp.ne.s32.totalorder %s200, %s202
      %p209 = scmp.eq.s32.totalorder %s25, 3
      %p210 = por %p208, %p209
      %p211 = scmp.ne.s32.totalorder %s202, %s203
      %p212 = scmp.eq.s32.totalorder %s25, 0
      %p213 = por %p211, %p212
      %p214 = scmp.ne.s32.totalorder %s202, %s203
      %p215 = scmp.eq.s32.totalorder %s26, 3
      %p216 = por %p214, %p215
      %p218 = scmp.ne.s32.totalorder %s203, %s217
      %p219 = scmp.eq.s32.totalorder %s26, 0
      %p220 = por %p218, %p219
      %s222 = sadd.s32 %s221, 1
      %p225 = scmp.eq.s32.totalorder %s20, 3
      %p226 = scmp.ne.s32.totalorder %s221, %s223
      %p227 = scmp.eq.s32.totalorder %s20, 0
      %p228 = por %p226, %p227
      %p229 = scmp.ne.s32.totalorder %s221, %s223
      %p230 = scmp.eq.s32.totalorder %s25, 3
      %p231 = por %p229, %p230
      %p232 = scmp.ne.s32.totalorder %s223, %s224
      %p233 = scmp.eq.s32.totalorder %s25, 0
      %p234 = por %p232, %p233
      %p235 = scmp.ne.s32.totalorder %s223, %s224
      %p236 = scmp.eq.s32.totalorder %s26, 3
      %p237 = por %p235, %p236
      %p239 = scmp.ne.s32.totalorder %s224, %s238
      %p240 = scmp.eq.s32.totalorder %s26, 0
      %p241 = por %p239, %p240
      %s243 = sadd.s32 %s242, 1
      %p246 = scmp.eq.s32.totalorder %s20, 3
      %p247 = scmp.ne.s32.totalorder %s242, %s244
      %p248 = scmp.eq.s32.totalorder %s20, 0
      %p249 = por %p247, %p248
      %p250 = scmp.ne.s32.totalorder %s242, %s244
      %p251 = scmp.eq.s32.totalorder %s25, 3
      %p252 = por %p250, %p251
      %p253 = scmp.ne.s32.totalorder %s244, %s245
      %p254 = scmp.eq.s32.totalorder %s25, 0
      %p255 = por %p253, %p254
      %p256 = scmp.ne.s32.totalorder %s244, %s245
      %p257 = scmp.eq.s32.totalorder %s26, 3
      %p258 = por %p256, %p257
      %p260 = scmp.ne.s32.totalorder %s245, %s259
      %p261 = scmp.eq.s32.totalorder %s26, 0
      %p262 = por %p260, %p261
      %s264 = sadd.s32 %s263, 1
      %p267 = scmp.eq.s32.totalorder %s20, 3
      %p268 = scmp.ne.s32.totalorder %s263, %s265
      %p269 = scmp.eq.s32.totalorder %s20, 0
      %p270 = por %p268, %p269
      %p271 = scmp.ne.s32.totalorder %s263, %s265
      %p272 = scmp.eq.s32.totalorder %s25, 3
      %p273 = por %p271, %p272
      %p274 = scmp.ne.s32.totalorder %s265, %s266
      %p275 = scmp.eq.s32.totalorder %s25, 0
      %p276 = por %p274, %p275
      %p277 = scmp.ne.s32.totalorder %s265, %s266
      %p278 = scmp.eq.s32.totalorder %s26, 3
      %p279 = por %p277, %p278
      %p281 = scmp.ne.s32.totalorder %s266, %s280
      %p282 = scmp.eq.s32.totalorder %s26, 0
      %p283 = por %p281, %p282
      %s284 = ssub.s32 %s20, %s27
      %p285 = scmp.eq.s32.totalorder %s284, 0
      %s287 = sadd.s32 %s286, 1
      %s288 = scalar_select %p285, %s286, %s287
      %p291 = pneg %p285
      %p292 = scmp.eq.s32.totalorder %s20, 3
      %p293 = por %p291, %p292
      %p294 = scmp.ne.s32.totalorder %s286, %s289
      %p295 = scmp.eq.s32.totalorder %s20, 0
      %p296 = por %p294, %p295
      %p297 = scmp.ne.s32.totalorder %s286, %s289
      %p298 = scmp.eq.s32.totalorder %s25, 3
      %p299 = por %p297, %p298
      %p300 = scmp.ne.s32.totalorder %s289, %s290
      %p301 = scmp.eq.s32.totalorder %s25, 0
      %p302 = por %p300, %p301
      %p303 = scmp.ne.s32.totalorder %s289, %s290
      %p304 = scmp.eq.s32.totalorder %s26, 3
      %p305 = por %p303, %p304
      %p307 = scmp.ne.s32.totalorder %s290, %s306
      %p308 = scmp.eq.s32.totalorder %s26, 0
      %p309 = por %p307, %p308
      %p310 = scmp.le.s32.totalorder 1, %s20
      %p311 = scmp.lt.s32.totalorder %s20, 5
      %p312 = pnand %p310, %p311
      %p313 = pneg %p312
      // Predicated region
      $region9: #{tpu_custom_call.1} parent=5 // pred_check
        _
      $region10: #{tpu_custom_call.1} parent=5 // pred_check_branch
        %315 = sbr.rel (%p312) target = $region12
      $region11: #{tpu_custom_call.1} parent=5 // pred_region
        %s316 = ssub.s32 %s20, 1
        // Predicated region
        $region13: #{tpu_custom_call.1} parent=11 // pred_check
          %p317 = pneg %p171
        $region14: #{tpu_custom_call.1} parent=11 // pred_check_branch
          %319 = sbr.rel (%p317) target = $region16
        $region15: #{tpu_custom_call.1} parent=11 // pred_region
          _
        $region16: #{tpu_custom_call.1} parent=11 // pred_fallthru
          _
        // Predicated region
        $region17: #{tpu_custom_call.1} parent=11 // pred_check
          %p320 = pneg %p192
        $region18: #{tpu_custom_call.1} parent=11 // pred_check_branch
          %322 = sbr.rel (%p320) target = $region20
        $region19: #{tpu_custom_call.1} parent=11 // pred_region
          _
        $region20: #{tpu_custom_call.1} parent=11 // pred_fallthru
          _
        // Predicated region
        $region21: #{tpu_custom_call.1} parent=11 // pred_check
          %p323 = pneg %p213
        $region22: #{tpu_custom_call.1} parent=11 // pred_check_branch
          %325 = sbr.rel (%p323) target = $region24
        $region23: #{tpu_custom_call.1} parent=11 // pred_region
          _
        $region24: #{tpu_custom_call.1} parent=11 // pred_fallthru
          _
        // Predicated region
        $region25: #{tpu_custom_call.1} parent=11 // pred_check
          %p326 = pneg %p234
        $region26: #{tpu_custom_call.1} parent=11 // pred_check_branch
          %328 = sbr.rel (%p326) target = $region28
        $region27: #{tpu_custom_call.1} parent=11 // pred_region
          _
        $region28: #{tpu_custom_call.1} parent=11 // pred_fallthru
          _
        // Predicated region
        $region29: #{tpu_custom_call.1} parent=11 // pred_check
          %p329 = pneg %p255
        $region30: #{tpu_custom_call.1} parent=11 // pred_check_branch
          %331 = sbr.rel (%p329) target = $region32
        $region31: #{tpu_custom_call.1} parent=11 // pred_region
          _
        $region32: #{tpu_custom_call.1} parent=11 // pred_fallthru
          _
        // Predicated region
        $region33: #{tpu_custom_call.1} parent=11 // pred_check
          %p332 = pneg %p276
        $region34: #{tpu_custom_call.1} parent=11 // pred_check_branch
          %334 = sbr.rel (%p332) target = $region36
        $region35: #{tpu_custom_call.1} parent=11 // pred_region
          _
        $region36: #{tpu_custom_call.1} parent=11 // pred_fallthru
          _
      $region12: #{tpu_custom_call.1} parent=5 // pred_fallthru
        _
      %p335 = scmp.lt.s32.totalorder %s20, 4
      // Predicated region
      $region37: #{tpu_custom_call.1} parent=5 // pred_check
        %p336 = pneg %p335
      $region38: #{tpu_custom_call.1} parent=5 // pred_check_branch
        %338 = sbr.rel (%p336) target = $region40
      $region39: #{tpu_custom_call.1} parent=5 // pred_region
        // Predicated region
        $region41: #{tpu_custom_call.1} parent=39 // pred_check
          %p339 = pneg %p40
        $region42: #{tpu_custom_call.1} parent=39 // pred_check_branch
          %341 = sbr.rel (%p339) target = $region44
        $region43: #{tpu_custom_call.1} parent=39 // pred_region
          %s342 = smul.u32 2, %s20
          %p343 = scmp.lt.s32.totalorder %s342, 7
          %s344 = scalar_select %p343, %s342, 7
          %s345 = smul.addr %s344, 4
          %s346 = scalar_lea.vmem %s0, %s345
          %s347 = smul.u32 2, %s20
        $region44: #{tpu_custom_call.1} parent=39 // pred_fallthru
          _
        // Predicated region
        $region45: #{tpu_custom_call.1} parent=39 // pred_check
          %p348 = pneg %p66
        $region46: #{tpu_custom_call.1} parent=39 // pred_check_branch
          %350 = sbr.rel (%p348) target = $region48
        $region47: #{tpu_custom_call.1} parent=39 // pred_region
          %s351 = smul.u32 2, %s20
          %p352 = scmp.lt.s32.totalorder %s351, 7
          %s353 = scalar_select %p352, %s351, 7
          %s354 = smul.addr %s353, 4
          %s355 = scalar_lea.vmem %s1, %s354
          %s356 = smul.u32 2, %s20
        $region48: #{tpu_custom_call.1} parent=39 // pred_fallthru
          _
        // Predicated region
        $region49: #{tpu_custom_call.1} parent=39 // pred_check
          %p357 = pneg %p92
        $region50: #{tpu_custom_call.1} parent=39 // pred_check_branch
          %359 = sbr.rel (%p357) target = $region52
        $region51: #{tpu_custom_call.1} parent=39 // pred_region
          %s360 = smul.u32 16, %s20
          %p361 = scmp.lt.s32.totalorder %s360, 63
          %s362 = scalar_select %p361, %s360, 63
          %s363 = smul.addr %s362, 4
          %s364 = scalar_lea.vmem %s2, %s363
          %s365 = smul.u32 16, %s20
        $region52: #{tpu_custom_call.1} parent=39 // pred_fallthru
          _
        // Predicated region
        $region53: #{tpu_custom_call.1} parent=39 // pred_check
          %p366 = pneg %p118
        $region54: #{tpu_custom_call.1} parent=39 // pred_check_branch
          %368 = sbr.rel (%p366) target = $region56
        $region55: #{tpu_custom_call.1} parent=39 // pred_region
          %s369 = smul.u32 16, %s20
          %p370 = scmp.lt.s32.totalorder %s369, 63
          %s371 = scalar_select %p370, %s369, 63
          %s372 = smul.addr %s371, 4
          %s373 = scalar_lea.vmem %s3, %s372
          %s374 = smul.u32 16, %s20
        $region56: #{tpu_custom_call.1} parent=39 // pred_fallthru
          _
        // Predicated region
        $region57: #{tpu_custom_call.1} parent=39 // pred_check
          %p375 = pneg %p144
        $region58: #{tpu_custom_call.1} parent=39 // pred_check_branch
          %377 = sbr.rel (%p375) target = $region60
        $region59: #{tpu_custom_call.1} parent=39 // pred_region
          %s378 = smul.u32 2, %s20
          %p379 = scmp.lt.s32.totalorder %s378, 7
          %s380 = scalar_select %p379, %s378, 7
          %s381 = smul.addr %s380, 4
          %s382 = scalar_lea.vmem %s4, %s381
          %s383 = smul.u32 2, %s20
        $region60: #{tpu_custom_call.1} parent=39 // pred_fallthru
          _
      $region40: #{tpu_custom_call.1} parent=5 // pred_fallthru
        _
      %p384 = scmp.le.s32.totalorder 1, %s20
      %p385 = scmp.lt.s32.totalorder %s20, 5
      %p386 = pnand %p384, %p385
      %p387 = pneg %p386
      // Predicated region
      $region61: #{tpu_custom_call.1} parent=5 // pred_check
        _
      $region62: #{tpu_custom_call.1} parent=5 // pred_check_branch
        %389 = sbr.rel (%p386) target = $region64
      $region63: #{tpu_custom_call.1} parent=5 // pred_region
        %s390 = ssub.s32 %s20, 1
        %s391 = smul.u32 2, %s25
        %p392 = scmp.lt.s32.totalorder %s391, 7
        %s393 = scalar_select %p392, %s391, 7
        %s394 = smul.addr %s393, 4
        %s395 = scalar_lea.vmem %s0, %s394
        %p396 = pneg %p46
        %p397 = pneg %p43
        %s398 = smul.u32 2, %s25
        %p399 = scmp.lt.s32.totalorder %s398, 7
        %s400 = scalar_select %p399, %s398, 7
        %s401 = smul.addr %s400, 4
        %s402 = scalar_lea.vmem %s1, %s401
        %p403 = pneg %p72
        %p404 = pneg %p69
        %s405 = smul.u32 16, %s25
        %p406 = scmp.lt.s32.totalorder %s405, 63
        %s407 = scalar_select %p406, %s405, 63
        %s408 = smul.addr %s407, 4
        %s409 = scalar_lea.vmem %s2, %s408
        %p410 = pneg %p98
        %p411 = pneg %p95
        %s412 = smul.u32 16, %s25
        %p413 = scmp.lt.s32.totalorder %s412, 63
        %s414 = scalar_select %p413, %s412, 63
        %s415 = smul.addr %s414, 4
        %s416 = scalar_lea.vmem %s3, %s415
        %p417 = pneg %p124
        %p418 = pneg %p121
        %s419 = smul.u32 2, %s25
        %p420 = scmp.lt.s32.totalorder %s419, 7
        %s421 = scalar_select %p420, %s419, 7
        %s422 = smul.addr %s421, 4
        %s423 = scalar_lea.vmem %s4, %s422
        %p424 = pneg %p150
        %p425 = pneg %p147
        %p426 = pneg %p171
        %p427 = pneg %p168
        %p428 = pneg %p192
        %p429 = pneg %p189
        %p430 = pneg %p213
        %p431 = pneg %p210
        %p432 = pneg %p234
        %p433 = pneg %p231
        %p434 = pneg %p255
        %p435 = pneg %p252
        %p436 = pneg %p276
        %p437 = pneg %p273
        %p438 = pneg %p302
        %p439 = pneg %p299
        %s440 = sand.u32 %s289, 1
        %s441 = scalar_lea.sflag [#allocation3], %s440
        %s442 = sand.u32 %s289, 1
        %s443 = smul.addr %s442, 32
        %s444 = scalar_lea.vmem [#allocation2], %s443
        %s445 = smul.u32 2, %s25
        %p446 = scmp.lt.s32.totalorder %s445, 7
        %s447 = scalar_select %p446, %s445, 7
        %s448 = smul.addr %s447, 4
        %s449 = scalar_lea.vmem %s0, %s448
        %s450 = smul.u32 2, %s25
        %s451 = smul.u32 2, %s25
        %p452 = scmp.lt.s32.totalorder %s451, 7
        %s453 = scalar_select %p452, %s451, 7
        %s454 = smul.addr %s453, 4
        %s455 = scalar_lea.vmem %s1, %s454
        %s456 = smul.u32 2, %s25
        %s457 = smul.u32 16, %s25
        %p458 = scmp.lt.s32.totalorder %s457, 63
        %s459 = scalar_select %p458, %s457, 63
        %s460 = smul.addr %s459, 4
        %s461 = scalar_lea.vmem %s2, %s460
        %s462 = smul.u32 16, %s25
        %s463 = smul.u32 16, %s25
        %p464 = scmp.lt.s32.totalorder %s463, 63
        %s465 = scalar_select %p464, %s463, 63
        %s466 = smul.addr %s465, 4
        %s467 = scalar_lea.vmem %s3, %s466
        %s468 = smul.u32 16, %s25
        %s469 = smul.u32 2, %s25
        %p470 = scmp.lt.s32.totalorder %s469, 7
        %s471 = scalar_select %p470, %s469, 7
        %s472 = smul.addr %s471, 4
        %s473 = scalar_lea.vmem %s4, %s472
        %s474 = smul.u32 2, %s25
        %s475 = smul.u32 2, %s25
        %v477 = vld [vmem:[%s461] sm:$0xf]
        %v478 = vld [vmem:[%s461 + $0x4] sm:$0xf]
        %v479 = vld [vmem:[%s461 + $0x8] sm:$0xf]
        %v480 = vld [vmem:[%s461 + $0xc] sm:$0xf]
        %v481 = vld [vmem:[%s461 + $0x10] sm:$0xf]
        %v482 = vld [vmem:[%s461 + $0x14] sm:$0xf]
        %v483 = vld [vmem:[%s461 + $0x18] sm:$0xf]
        %v484 = vld [vmem:[%s461 + $0x1c] sm:$0xf]
        %v485 = vld [vmem:[%s461 + $0x20] sm:$0xf]
        %v486 = vld [vmem:[%s461 + $0x24] sm:$0xf]
        %v487 = vld [vmem:[%s461 + $0x28] sm:$0xf]
        %v488 = vld [vmem:[%s461 + $0x2c] sm:$0xf]
        %v489 = vld [vmem:[%s461 + $0x30] sm:$0xf]
        %v490 = vld [vmem:[%s461 + $0x34] sm:$0xf]
        %v491 = vld [vmem:[%s461 + $0x38] sm:$0xf]
        %v492 = vld [vmem:[%s461 + $0x3c] sm:$0xf]
        %v493 = vld [vmem:[%s5] sm:$0xf]
        %v494 = vld [vmem:[%s5 + $0x4] sm:$0xf]
        %v495 = vld [vmem:[%s5 + $0x8] sm:$0xf]
        %v496 = vld [vmem:[%s5 + $0xc] sm:$0xf]
        %v497 = vld [vmem:[%s5 + $0x10] sm:$0xf]
        %v498 = vld [vmem:[%s5 + $0x14] sm:$0xf]
        %v499 = vld [vmem:[%s5 + $0x18] sm:$0xf]
        %v500 = vld [vmem:[%s5 + $0x1c] sm:$0xf]
        %v501 = vld [vmem:[%s6] sm:$0x1]
        %v503 = vlaneseq
        %v504 = vshrl.u32 %v503, 7
        %v505 = vsub.s32 0, %v504
        %v506 = vrot.slane %v501, %v505
        %v524 = vunpack.c.l.b16 %v477
        %v525 = vunpack.c.l.b16 %v478
        %v526 = vunpack.c.l.b16 %v479
        %v527 = vunpack.c.l.b16 %v480
        %v528 = vunpack.c.l.b16 %v481
        %v529 = vunpack.c.l.b16 %v482
        %v530 = vunpack.c.l.b16 %v483
        %v531 = vunpack.c.l.b16 %v484
        %v532 = vunpack.c.l.b16 %v485
        %v533 = vunpack.c.l.b16 %v486
        %v534 = vunpack.c.l.b16 %v487
        %v535 = vunpack.c.l.b16 %v488
        %v536 = vunpack.c.l.b16 %v489
        %v537 = vunpack.c.l.b16 %v490
        %v538 = vunpack.c.l.b16 %v491
        %v539 = vunpack.c.l.b16 %v492
        %v540 = vpack.c.b16 %v525, %v524
        %v541 = vpack.c.b16 %v527, %v526
        %v542 = vpack.c.b16 %v529, %v528
        %v543 = vpack.c.b16 %v531, %v530
        %v544 = vpack.c.b16 %v533, %v532
        %v545 = vpack.c.b16 %v535, %v534
        %v546 = vpack.c.b16 %v537, %v536
        %v547 = vpack.c.b16 %v539, %v538
        %v556 = vunpack.c.l.b16 %v493
        %v557 = vunpack.c.l.b16 %v494
        %v558 = vunpack.c.l.b16 %v495
        %v559 = vunpack.c.l.b16 %v496
        %v560 = vunpack.c.l.b16 %v497
        %v561 = vunpack.c.l.b16 %v498
        %v562 = vunpack.c.l.b16 %v499
        %v563 = vunpack.c.l.b16 %v500
        %v564 = vpack.c.b16 %v557, %v556
        %v565 = vpack.c.b16 %v559, %v558
        %v566 = vpack.c.b16 %v561, %v560
        %v567 = vpack.c.b16 %v563, %v562
        %vm572 = vcmask 523264
        %v574 = vsel %vm572, %v540, 0
        %v577 = vsel %vm572, %v541, 0
        %v580 = vsel %vm572, %v542, 0
        %v583 = vsel %vm572, %v543, 0
        %v586 = vsel %vm572, %v544, 0
        %v589 = vsel %vm572, %v545, 0
        %v592 = vsel %vm572, %v546, 0
        %v595 = vsel %vm572, %v547, 0
        %597 = vmatprep.subr.bf16.mxu0 0
        %598 = vmatpush1.bf16.msra.mxu0 %v564
        %599 = vmatprep.subr.bf16.mxu0 0
        %600 = vmatpush1.bf16.msra.mxu0 %v565
        %601 = vmatprep.subr.bf16.mxu0 0
        %602 = vmatpush1.bf16.msra.mxu0 %v566
        %603 = vmatprep.subr.bf16.mxu0 0
        %604 = vmatpush1.bf16.msra.mxu0 %v567
        %605 = vmatprep.subr.bf16.mxu0 0
        %606 = vmatpush1.bf16.msra.mxu0 0
        %607 = vmatprep.subr.bf16.mxu0 0
        %608 = vmatpush1.bf16.msra.mxu0 0
        %609 = vmatprep.subr.bf16.mxu0 0
        %610 = vmatpush1.bf16.msra.mxu0 0
        %611 = vmatprep.subr.bf16.mxu0 0
        %612 = vmatpush1.bf16.msra.mxu0 0
        %613 = vmatprep.subr.bf16.mxu0 0
        %614 = vmatpush1.bf16.msra.mxu0 0
        %615 = vmatprep.subr.bf16.mxu0 0
        %616 = vmatpush1.bf16.msra.mxu0 0
        %617 = vmatprep.subr.bf16.mxu0 0
        %618 = vmatpush1.bf16.msra.mxu0 0
        %619 = vmatprep.subr.bf16.mxu0 0
        %620 = vmatpush1.bf16.msra.mxu0 0
        %621 = vmatprep.subr.bf16.mxu0 0
        %622 = vmatpush1.bf16.msra.mxu0 0
        %623 = vmatprep.subr.bf16.mxu0 0
        %624 = vmatpush1.bf16.msra.mxu0 0
        %625 = vmatprep.subr.bf16.mxu0 0
        %626 = vmatpush1.bf16.msra.mxu0 0
        %627 = vmatprep.subr.bf16.mxu0 0
        %628 = vmatpush1.bf16.msra.mxu0 0
        %629 = vmatprep.mubr.bf16.mxu0 0
        %630 = vmatmul.mubr.bf16.gmra.mrb[0].mxu0 %v574
        %v631 = vpop.f32.mrb[0].mxu0
        %v632 = vadd.f32 %v506, %v631
        %v633 = vpop.f32.mrb[0].mxu0
        %v634 = vpop.f32.mrb[0].mxu0
        %v635 = vadd.f32 %v506, %v634
        %v636 = vpop.f32.mrb[0].mxu0
        %637 = vmatprep.mubr.bf16.mxu0 0
        %638 = vmatmul.mubr.bf16.gmra.mrb[0].mxu0 %v577
        %v639 = vpop.f32.mrb[0].mxu0
        %v640 = vadd.f32 %v506, %v639
        %v641 = vpop.f32.mrb[0].mxu0
        %v642 = vpop.f32.mrb[0].mxu0
        %v643 = vadd.f32 %v506, %v642
        %v644 = vpop.f32.mrb[0].mxu0
        %645 = vmatprep.mubr.bf16.mxu0 0
        %646 = vmatmul.mubr.bf16.gmra.mrb[0].mxu0 %v580
        %v647 = vpop.f32.mrb[0].mxu0
        %v648 = vadd.f32 %v506, %v647
        %v649 = vpop.f32.mrb[0].mxu0
        %v650 = vpop.f32.mrb[0].mxu0
        %v651 = vadd.f32 %v506, %v650
        %v652 = vpop.f32.mrb[0].mxu0
        %653 = vmatprep.mubr.bf16.mxu0 0
        %654 = vmatmul.mubr.bf16.gmra.mrb[0].mxu0 %v583
        %v655 = vpop.f32.mrb[0].mxu0
        %v656 = vadd.f32 %v506, %v655
        %v657 = vpop.f32.mrb[0].mxu0
        %v658 = vpop.f32.mrb[0].mxu0
        %v659 = vadd.f32 %v506, %v658
        %v660 = vpop.f32.mrb[0].mxu0
        %661 = vmatprep.mubr.bf16.mxu0 0
        %662 = vmatmul.mubr.bf16.gmra.mrb[0].mxu0 %v586
        %v663 = vpop.f32.mrb[0].mxu0
        %v664 = vadd.f32 %v506, %v663
        %v665 = vpop.f32.mrb[0].mxu0
        %v666 = vpop.f32.mrb[0].mxu0
        %v667 = vadd.f32 %v506, %v666
        %v668 = vpop.f32.mrb[0].mxu0
        %669 = vmatprep.mubr.bf16.mxu0 0
        %670 = vmatmul.mubr.bf16.gmra.mrb[0].mxu0 %v589
        %v671 = vpop.f32.mrb[0].mxu0
        %v672 = vadd.f32 %v506, %v671
        %v673 = vpop.f32.mrb[0].mxu0
        %v674 = vpop.f32.mrb[0].mxu0
        %v675 = vadd.f32 %v506, %v674
        %v676 = vpop.f32.mrb[0].mxu0
        %677 = vmatprep.mubr.bf16.mxu0 0
        %678 = vmatmul.mubr.bf16.gmra.mrb[0].mxu0 %v592
        %v679 = vpop.f32.mrb[0].mxu0
        %v680 = vadd.f32 %v506, %v679
        %v681 = vpop.f32.mrb[0].mxu0
        %v682 = vpop.f32.mrb[0].mxu0
        %v683 = vadd.f32 %v506, %v682
        %v684 = vpop.f32.mrb[0].mxu0
        %685 = vmatprep.mubr.bf16.mxu0 0
        %686 = vmatmul.mubr.bf16.gmra.mrb[0].mxu0 %v595
        %v687 = vpop.f32.mrb[0].mxu0
        %v688 = vadd.f32 %v506, %v687
        %v689 = vpop.f32.mrb[0].mxu0
        %v690 = vpop.f32.mrb[0].mxu0
        %v691 = vadd.f32 %v506, %v690
        %v692 = vpop.f32.mrb[0].mxu0
        %693 = vdwg.mxu0
        %v694 = vmax.f32 %v632, 0.0
        %v695 = vmax.f32 %v635, 0.0
        %v696 = vmax.f32 %v640, 0.0
        %v697 = vmax.f32 %v643, 0.0
        %v698 = vmax.f32 %v648, 0.0
        %v699 = vmax.f32 %v651, 0.0
        %v700 = vmax.f32 %v656, 0.0
        %v701 = vmax.f32 %v659, 0.0
        %v702 = vmax.f32 %v664, 0.0
        %v703 = vmax.f32 %v667, 0.0
        %v704 = vmax.f32 %v672, 0.0
        %v705 = vmax.f32 %v675, 0.0
        %v706 = vmax.f32 %v680, 0.0
        %v707 = vmax.f32 %v683, 0.0
        %v708 = vmax.f32 %v688, 0.0
        %v709 = vmax.f32 %v691, 0.0
        %v710 = vpack.c.bf16 %v695, %v694
        %v711 = vpack.c.bf16 %v697, %v696
        %v712 = vpack.c.bf16 %v699, %v698
        %v713 = vpack.c.bf16 %v701, %v700
        %v714 = vpack.c.bf16 %v703, %v702
        %v715 = vpack.c.bf16 %v705, %v704
        %v716 = vpack.c.bf16 %v707, %v706
        %v717 = vpack.c.bf16 %v709, %v708
        %v718 = vld [vmem:[%s7] sm:$0xf]
        %v719 = vld [vmem:[%s7 + $0x4] sm:$0xf]
        %v720 = vld [vmem:[%s7 + $0x8] sm:$0xf]
        %v721 = vld [vmem:[%s7 + $0xc] sm:$0xf]
        %v722 = vld [vmem:[%s7 + $0x10] sm:$0xf]
        %v723 = vld [vmem:[%s7 + $0x14] sm:$0xf]
        %v724 = vld [vmem:[%s7 + $0x18] sm:$0xf]
        %v725 = vld [vmem:[%s7 + $0x1c] sm:$0xf]
        %v726 = vld [vmem:[%s8] sm:$0x1]
        %v728 = vlaneseq
        %v729 = vshrl.u32 %v728, 7
        %v730 = vsub.s32 0, %v729
        %v731 = vrot.slane %v726, %v730
        %v741 = vunpack.c.l.b16 %v718
        %v742 = vunpack.c.l.b16 %v719
        %v743 = vunpack.c.l.b16 %v720
        %v744 = vunpack.c.l.b16 %v721
        %v745 = vunpack.c.l.b16 %v722
        %v746 = vunpack.c.l.b16 %v723
        %v747 = vunpack.c.l.b16 %v724
        %v748 = vunpack.c.l.b16 %v725
        %v749 = vpack.c.b16 %v742, %v741
        %v750 = vpack.c.b16 %v744, %v743
        %v751 = vpack.c.b16 %v746, %v745
        %v752 = vpack.c.b16 %v748, %v747
        %v758 = vsel %vm572, %v710, 0
        %v761 = vsel %vm572, %v711, 0
        %v764 = vsel %vm572, %v712, 0
        %v767 = vsel %vm572, %v713, 0
        %v770 = vsel %vm572, %v714, 0
        %v773 = vsel %vm572, %v715, 0
        %v776 = vsel %vm572, %v716, 0
        %v779 = vsel %vm572, %v717, 0
        %781 = vmatprep.subr.bf16.mxu0 0
        %782 = vmatpush1.bf16.msra.mxu0 %v749
        %783 = vmatprep.subr.bf16.mxu0 0
        %784 = vmatpush1.bf16.msra.mxu0 %v750
        %785 = vmatprep.subr.bf16.mxu0 0
        %786 = vmatpush1.bf16.msra.mxu0 %v751
        %787 = vmatprep.subr.bf16.mxu0 0
        %788 = vmatpush1.bf16.msra.mxu0 %v752
        %789 = vmatprep.subr.bf16.mxu0 0
        %790 = vmatpush1.bf16.msra.mxu0 0
        %791 = vmatprep.subr.bf16.mxu0 0
        %792 = vmatpush1.bf16.msra.mxu0 0
        %793 = vmatprep.subr.bf16.mxu0 0
        %794 = vmatpush1.bf16.msra.mxu0 0
        %795 = vmatprep.subr.bf16.mxu0 0
        %796 = vmatpush1.bf16.msra.mxu0 0
        %797 = vmatprep.subr.bf16.mxu0 0
        %798 = vmatpush1.bf16.msra.mxu0 0
        %799 = vmatprep.subr.bf16.mxu0 0
        %800 = vmatpush1.bf16.msra.mxu0 0
        %801 = vmatprep.subr.bf16.mxu0 0
        %802 = vmatpush1.bf16.msra.mxu0 0
        %803 = vmatprep.subr.bf16.mxu0 0
        %804 = vmatpush1.bf16.msra.mxu0 0
        %805 = vmatprep.subr.bf16.mxu0 0
        %806 = vmatpush1.bf16.msra.mxu0 0
        %807 = vmatprep.subr.bf16.mxu0 0
        %808 = vmatpush1.bf16.msra.mxu0 0
        %809 = vmatprep.subr.bf16.mxu0 0
        %810 = vmatpush1.bf16.msra.mxu0 0
        %811 = vmatprep.subr.bf16.mxu0 0
        %812 = vmatpush1.bf16.msra.mxu0 0
        %813 = vmatprep.mubr.bf16.mxu0 0
        %814 = vmatmul.mubr.bf16.gmra.mrb[0].mxu0 %v758
        %v815 = vpop.f32.mrb[0].mxu0
        %v816 = vadd.f32 %v731, %v815
        %v817 = vpop.f32.mrb[0].mxu0
        %v818 = vpop.f32.mrb[0].mxu0
        %v819 = vadd.f32 %v731, %v818
        %v820 = vpop.f32.mrb[0].mxu0
        %821 = vmatprep.mubr.bf16.mxu0 0
        %822 = vmatmul.mubr.bf16.gmra.mrb[0].mxu0 %v761
        %v823 = vpop.f32.mrb[0].mxu0
        %v824 = vadd.f32 %v731, %v823
        %v825 = vpop.f32.mrb[0].mxu0
        %v826 = vpop.f32.mrb[0].mxu0
        %v827 = vadd.f32 %v731, %v826
        %v828 = vpop.f32.mrb[0].mxu0
        %829 = vmatprep.mubr.bf16.mxu0 0
        %830 = vmatmul.mubr.bf16.gmra.mrb[0].mxu0 %v764
        %v831 = vpop.f32.mrb[0].mxu0
        %v832 = vadd.f32 %v731, %v831
        %v833 = vpop.f32.mrb[0].mxu0
        %v834 = vpop.f32.mrb[0].mxu0
        %v835 = vadd.f32 %v731, %v834
        %v836 = vpop.f32.mrb[0].mxu0
        %837 = vmatprep.mubr.bf16.mxu0 0
        %838 = vmatmul.mubr.bf16.gmra.mrb[0].mxu0 %v767
        %v839 = vpop.f32.mrb[0].mxu0
        %v840 = vadd.f32 %v731, %v839
        %v841 = vpop.f32.mrb[0].mxu0
        %v842 = vpop.f32.mrb[0].mxu0
        %v843 = vadd.f32 %v731, %v842
        %v844 = vpop.f32.mrb[0].mxu0
        %845 = vmatprep.mubr.bf16.mxu0 0
        %846 = vmatmul.mubr.bf16.gmra.mrb[0].mxu0 %v770
        %v847 = vpop.f32.mrb[0].mxu0
        %v848 = vadd.f32 %v731, %v847
        %v849 = vpop.f32.mrb[0].mxu0
        %v850 = vpop.f32.mrb[0].mxu0
        %v851 = vadd.f32 %v731, %v850
        %v852 = vpop.f32.mrb[0].mxu0
        %853 = vmatprep.mubr.bf16.mxu0 0
        %854 = vmatmul.mubr.bf16.gmra.mrb[0].mxu0 %v773
        %v855 = vpop.f32.mrb[0].mxu0
        %v856 = vadd.f32 %v731, %v855
        %v857 = vpop.f32.mrb[0].mxu0
        %v858 = vpop.f32.mrb[0].mxu0
        %v859 = vadd.f32 %v731, %v858
        %v860 = vpop.f32.mrb[0].mxu0
        %861 = vmatprep.mubr.bf16.mxu0 0
        %862 = vmatmul.mubr.bf16.gmra.mrb[0].mxu0 %v776
        %v863 = vpop.f32.mrb[0].mxu0
        %v864 = vadd.f32 %v731, %v863
        %v865 = vpop.f32.mrb[0].mxu0
        %v866 = vpop.f32.mrb[0].mxu0
        %v867 = vadd.f32 %v731, %v866
        %v868 = vpop.f32.mrb[0].mxu0
        %869 = vmatprep.mubr.bf16.mxu0 0
        %870 = vmatmul.mubr.bf16.gmra.mrb[0].mxu0 %v779
        %v871 = vpop.f32.mrb[0].mxu0
        %v872 = vadd.f32 %v731, %v871
        %v873 = vpop.f32.mrb[0].mxu0
        %v874 = vpop.f32.mrb[0].mxu0
        %v875 = vadd.f32 %v731, %v874
        %v876 = vpop.f32.mrb[0].mxu0
        %877 = vdwg.mxu0
        %vm878 = vcmask 261120
        %v879 = vsel %vm878, %v816, 0.0
        %880 = vadd.xlane.f32.xlu0 %v879
        %v881 = vpop.xlane.xlu0 %880
        %v882 = vsel %vm878, %v819, 0.0
        %883 = vadd.xlane.f32.xlu0 %v882
        %v884 = vpop.xlane.xlu0 %883
        %v885 = vsel %vm878, %v824, 0.0
        %886 = vadd.xlane.f32.xlu0 %v885
        %v887 = vpop.xlane.xlu0 %886
        %v888 = vsel %vm878, %v827, 0.0
        %889 = vadd.xlane.f32.xlu0 %v888
        %v890 = vpop.xlane.xlu0 %889
        %v891 = vsel %vm878, %v832, 0.0
        %892 = vadd.xlane.f32.xlu0 %v891
        %v893 = vpop.xlane.xlu0 %892
        %v894 = vsel %vm878, %v835, 0.0
        %895 = vadd.xlane.f32.xlu0 %v894
        %v896 = vpop.xlane.xlu0 %895
        %v897 = vsel %vm878, %v840, 0.0
        %898 = vadd.xlane.f32.xlu0 %v897
        %v899 = vpop.xlane.xlu0 %898
        %v900 = vsel %vm878, %v843, 0.0
        %901 = vadd.xlane.f32.xlu0 %v900
        %v902 = vpop.xlane.xlu0 %901
        %v903 = vsel %vm878, %v848, 0.0
        %904 = vadd.xlane.f32.xlu0 %v903
        %v905 = vpop.xlane.xlu0 %904
        %v906 = vsel %vm878, %v851, 0.0
        %907 = vadd.xlane.f32.xlu0 %v906
        %v908 = vpop.xlane.xlu0 %907
        %v909 = vsel %vm878, %v856, 0.0
        %910 = vadd.xlane.f32.xlu0 %v909
        %v911 = vpop.xlane.xlu0 %910
        %v912 = vsel %vm878, %v859, 0.0
        %913 = vadd.xlane.f32.xlu0 %v912
        %v914 = vpop.xlane.xlu0 %913
        %v915 = vsel %vm878, %v864, 0.0
        %916 = vadd.xlane.f32.xlu0 %v915
        %v917 = vpop.xlane.xlu0 %916
        %v918 = vsel %vm878, %v867, 0.0
        %919 = vadd.xlane.f32.xlu0 %v918
        %v920 = vpop.xlane.xlu0 %919
        %v921 = vsel %vm878, %v872, 0.0
        %922 = vadd.xlane.f32.xlu0 %v921
        %v923 = vpop.xlane.xlu0 %922
        %v924 = vsel %vm878, %v875, 0.0
        %925 = vadd.xlane.f32.xlu0 %v924
        %v926 = vpop.xlane.xlu0 %925
        %v927 = vrcp.pop 32.0
        %v928 = vmul.f32 %v881, %v927
        %v929 = vmul.f32 %v884, %v927
        %v930 = vmul.f32 %v887, %v927
        %v931 = vmul.f32 %v890, %v927
        %v932 = vmul.f32 %v893, %v927
        %v933 = vmul.f32 %v896, %v927
        %v934 = vmul.f32 %v899, %v927
        %v935 = vmul.f32 %v902, %v927
        %v936 = vmul.f32 %v905, %v927
        %v937 = vmul.f32 %v908, %v927
        %v938 = vmul.f32 %v911, %v927
        %v939 = vmul.f32 %v914, %v927
        %v940 = vmul.f32 %v917, %v927
        %v941 = vmul.f32 %v920, %v927
        %v942 = vmul.f32 %v923, %v927
        %v943 = vmul.f32 %v926, %v927
        %v944 = vsub.f32 %v816, %v928
        %v945 = vsub.f32 %v819, %v929
        %v946 = vsub.f32 %v824, %v930
        %v947 = vsub.f32 %v827, %v931
        %v948 = vsub.f32 %v832, %v932
        %v949 = vsub.f32 %v835, %v933
        %v950 = vsub.f32 %v840, %v934
        %v951 = vsub.f32 %v843, %v935
        %v952 = vsub.f32 %v848, %v936
        %v953 = vsub.f32 %v851, %v937
        %v954 = vsub.f32 %v856, %v938
        %v955 = vsub.f32 %v859, %v939
        %v956 = vsub.f32 %v864, %v940
        %v957 = vsub.f32 %v867, %v941
        %v958 = vsub.f32 %v872, %v942
        %v959 = vsub.f32 %v875, %v943
        %v960 = vmul.f32 %v944, %v944
        %v961 = vmul.f32 %v945, %v945
        %v962 = vmul.f32 %v946, %v946
        %v963 = vmul.f32 %v947, %v947
        %v964 = vmul.f32 %v948, %v948
        %v965 = vmul.f32 %v949, %v949
        %v966 = vmul.f32 %v950, %v950
        %v967 = vmul.f32 %v951, %v951
        %v968 = vmul.f32 %v952, %v952
        %v969 = vmul.f32 %v953, %v953
        %v970 = vmul.f32 %v954, %v954
        %v971 = vmul.f32 %v955, %v955
        %v972 = vmul.f32 %v956, %v956
        %v973 = vmul.f32 %v957, %v957
        %v974 = vmul.f32 %v958, %v958
        %v975 = vmul.f32 %v959, %v959
        %v976 = vsel %vm878, %v960, 0.0
        %977 = vadd.xlane.f32.xlu0 %v976
        %v978 = vpop.xlane.xlu0 %977
        %v979 = vsel %vm878, %v961, 0.0
        %980 = vadd.xlane.f32.xlu0 %v979
        %v981 = vpop.xlane.xlu0 %980
        %v982 = vsel %vm878, %v962, 0.0
        %983 = vadd.xlane.f32.xlu0 %v982
        %v984 = vpop.xlane.xlu0 %983
        %v985 = vsel %vm878, %v963, 0.0
        %986 = vadd.xlane.f32.xlu0 %v985
        %v987 = vpop.xlane.xlu0 %986
        %v988 = vsel %vm878, %v964, 0.0
        %989 = vadd.xlane.f32.xlu0 %v988
        %v990 = vpop.xlane.xlu0 %989
        %v991 = vsel %vm878, %v965, 0.0
        %992 = vadd.xlane.f32.xlu0 %v991
        %v993 = vpop.xlane.xlu0 %992
        %v994 = vsel %vm878, %v966, 0.0
        %995 = vadd.xlane.f32.xlu0 %v994
        %v996 = vpop.xlane.xlu0 %995
        %v997 = vsel %vm878, %v967, 0.0
        %998 = vadd.xlane.f32.xlu0 %v997
        %v999 = vpop.xlane.xlu0 %998
        %v1000 = vsel %vm878, %v968, 0.0
        %1001 = vadd.xlane.f32.xlu0 %v1000
        %v1002 = vpop.xlane.xlu0 %1001
        %v1003 = vsel %vm878, %v969, 0.0
        %1004 = vadd.xlane.f32.xlu0 %v1003
        %v1005 = vpop.xlane.xlu0 %1004
        %v1006 = vsel %vm878, %v970, 0.0
        %1007 = vadd.xlane.f32.xlu0 %v1006
        %v1008 = vpop.xlane.xlu0 %1007
        %v1009 = vsel %vm878, %v971, 0.0
        %1010 = vadd.xlane.f32.xlu0 %v1009
        %v1011 = vpop.xlane.xlu0 %1010
        %v1012 = vsel %vm878, %v972, 0.0
        %1013 = vadd.xlane.f32.xlu0 %v1012
        %v1014 = vpop.xlane.xlu0 %1013
        %v1015 = vsel %vm878, %v973, 0.0
        %1016 = vadd.xlane.f32.xlu0 %v1015
        %v1017 = vpop.xlane.xlu0 %1016
        %v1018 = vsel %vm878, %v974, 0.0
        %1019 = vadd.xlane.f32.xlu0 %v1018
        %v1020 = vpop.xlane.xlu0 %1019
        %v1021 = vsel %vm878, %v975, 0.0
        %1022 = vadd.xlane.f32.xlu0 %v1021
        %v1023 = vpop.xlane.xlu0 %1022
        %v1024 = vmul.f32 %v978, %v927
        %v1025 = vmul.f32 %v981, %v927
        %v1026 = vmul.f32 %v984, %v927
        %v1027 = vmul.f32 %v987, %v927
        %v1028 = vmul.f32 %v990, %v927
        %v1029 = vmul.f32 %v993, %v927
        %v1030 = vmul.f32 %v996, %v927
        %v1031 = vmul.f32 %v999, %v927
        %v1032 = vmul.f32 %v1002, %v927
        %v1033 = vmul.f32 %v1005, %v927
        %v1034 = vmul.f32 %v1008, %v927
        %v1035 = vmul.f32 %v1011, %v927
        %v1036 = vmul.f32 %v1014, %v927
        %v1037 = vmul.f32 %v1017, %v927
        %v1038 = vmul.f32 %v1020, %v927
        %v1039 = vmul.f32 %v1023, %v927
        %v1040 = vadd.f32 %v1024, 1e-05
        %v1041 = vadd.f32 %v1025, 1e-05
        %v1042 = vadd.f32 %v1026, 1e-05
        %v1043 = vadd.f32 %v1027, 1e-05
        %v1044 = vadd.f32 %v1028, 1e-05
        %v1045 = vadd.f32 %v1029, 1e-05
        %v1046 = vadd.f32 %v1030, 1e-05
        %v1047 = vadd.f32 %v1031, 1e-05
        %v1048 = vadd.f32 %v1032, 1e-05
        %v1049 = vadd.f32 %v1033, 1e-05
        %v1050 = vadd.f32 %v1034, 1e-05
        %v1051 = vadd.f32 %v1035, 1e-05
        %v1052 = vadd.f32 %v1036, 1e-05
        %v1053 = vadd.f32 %v1037, 1e-05
        %v1054 = vadd.f32 %v1038, 1e-05
        %v1055 = vadd.f32 %v1039, 1e-05
        %v1056 = vrsqrt.pop %v1040
        %v1057 = vrsqrt.pop %v1041
        %v1058 = vrsqrt.pop %v1042
        %v1059 = vrsqrt.pop %v1043
        %v1060 = vrsqrt.pop %v1044
        %v1061 = vrsqrt.pop %v1045
        %v1062 = vrsqrt.pop %v1046
        %v1063 = vrsqrt.pop %v1047
        %v1064 = vrsqrt.pop %v1048
        %v1065 = vrsqrt.pop %v1049
        %v1066 = vrsqrt.pop %v1050
        %v1067 = vrsqrt.pop %v1051
        %v1068 = vrsqrt.pop %v1052
        %v1069 = vrsqrt.pop %v1053
        %v1070 = vrsqrt.pop %v1054
        %v1071 = vrsqrt.pop %v1055
        %v1072 = vmul.f32 %v944, %v1056
        %v1073 = vmul.f32 %v945, %v1057
        %v1074 = vmul.f32 %v946, %v1058
        %v1075 = vmul.f32 %v947, %v1059
        %v1076 = vmul.f32 %v948, %v1060
        %v1077 = vmul.f32 %v949, %v1061
        %v1078 = vmul.f32 %v950, %v1062
        %v1079 = vmul.f32 %v951, %v1063
        %v1080 = vmul.f32 %v952, %v1064
        %v1081 = vmul.f32 %v953, %v1065
        %v1082 = vmul.f32 %v954, %v1066
        %v1083 = vmul.f32 %v955, %v1067
        %v1084 = vmul.f32 %v956, %v1068
        %v1085 = vmul.f32 %v957, %v1069
        %v1086 = vmul.f32 %v958, %v1070
        %v1087 = vmul.f32 %v959, %v1071
        %v1088 = vld [vmem:[%s9] sm:$0x1]
        %v1090 = vlaneseq
        %v1091 = vshrl.u32 %v1090, 7
        %v1092 = vsub.s32 0, %v1091
        %v1093 = vrot.slane %v1088, %v1092
        %v1095 = vmul.f32 %v1072, %v1093
        %v1096 = vmul.f32 %v1073, %v1093
        %v1097 = vmul.f32 %v1074, %v1093
        %v1098 = vmul.f32 %v1075, %v1093
        %v1099 = vmul.f32 %v1076, %v1093
        %v1100 = vmul.f32 %v1077, %v1093
        %v1101 = vmul.f32 %v1078, %v1093
        %v1102 = vmul.f32 %v1079, %v1093
        %v1103 = vmul.f32 %v1080, %v1093
        %v1104 = vmul.f32 %v1081, %v1093
        %v1105 = vmul.f32 %v1082, %v1093
        %v1106 = vmul.f32 %v1083, %v1093
        %v1107 = vmul.f32 %v1084, %v1093
        %v1108 = vmul.f32 %v1085, %v1093
        %v1109 = vmul.f32 %v1086, %v1093
        %v1110 = vmul.f32 %v1087, %v1093
        %v1111 = vld [vmem:[%s10] sm:$0x1]
        %v1113 = vlaneseq
        %v1114 = vshrl.u32 %v1113, 7
        %v1115 = vsub.s32 0, %v1114
        %v1116 = vrot.slane %v1111, %v1115
        %v1118 = vadd.f32 %v1095, %v1116
        %v1119 = vadd.f32 %v1096, %v1116
        %v1120 = vadd.f32 %v1097, %v1116
        %v1121 = vadd.f32 %v1098, %v1116
        %v1122 = vadd.f32 %v1099, %v1116
        %v1123 = vadd.f32 %v1100, %v1116
        %v1124 = vadd.f32 %v1101, %v1116
        %v1125 = vadd.f32 %v1102, %v1116
        %v1126 = vadd.f32 %v1103, %v1116
        %v1127 = vadd.f32 %v1104, %v1116
        %v1128 = vadd.f32 %v1105, %v1116
        %v1129 = vadd.f32 %v1106, %v1116
        %v1130 = vadd.f32 %v1107, %v1116
        %v1131 = vadd.f32 %v1108, %v1116
        %v1132 = vadd.f32 %v1109, %v1116
        %v1133 = vadd.f32 %v1110, %v1116
        %v1134 = vld [vmem:[%s473] sm:$0xf]
        %v1135 = vld [vmem:[%s473 + $0x4] sm:$0xf]
        %v1136 = vunpack.c.l.bf16 %v1134
        %v1137 = vunpack.c.l.bf16 %v1135
        %vm1138 = vcmask 56320
        %v1139 = vsel %vm1138, %v1136, 0.0
        %1140 = vadd.xlane.f32.xlu0 %v1139
        %v1141 = vpop.xlane.xlu0 %1140
        %v1142 = vsel %vm1138, %v1137, 0.0
        %1143 = vadd.xlane.f32.xlu0 %v1142
        %v1144 = vpop.xlane.xlu0 %1143
        %v1145 = vmax.f32 %v1141, 1.0
        %v1146 = vmax.f32 %v1144, 1.0
        %v1147 = vrcp.pop %v1145
        %v1148 = vmul.f32 1.0, %v1147
        %v1149 = vrcp.pop %v1146
        %v1150 = vmul.f32 1.0, %v1149
        %v1151 = vmul.f32 %v1136, %v1148
        %v1152 = vmul.f32 %v1137, %v1150
        %v1153 = vlaneseq
        %v1154 = vshrl.u32 %v1153, 7
        %v1155 = vsub.s32 0, %v1154
        %v1156 = vrot.slane %v1151, %v1155
        %1158 = vbcast.lane.b32.xlu0 %v1156, 256
        %v1159 = vpop.permute.xlu0 %1158
        %v1160 = vlaneseq
        %v1161 = vshrl.u32 %v1160, 7
        %v1162 = vsub.s32 1, %v1161
        %v1163 = vrot.slane %v1151, %v1162
        %1165 = vbcast.lane.b32.xlu0 %v1163, 256
        %v1166 = vpop.permute.xlu0 %1165
        %v1167 = vlaneseq
        %v1168 = vshrl.u32 %v1167, 7
        %v1169 = vsub.s32 2, %v1168
        %v1170 = vrot.slane %v1151, %v1169
        %1172 = vbcast.lane.b32.xlu0 %v1170, 256
        %v1173 = vpop.permute.xlu0 %1172
        %v1174 = vlaneseq
        %v1175 = vshrl.u32 %v1174, 7
        %v1176 = vsub.s32 3, %v1175
        %v1177 = vrot.slane %v1151, %v1176
        %1179 = vbcast.lane.b32.xlu0 %v1177, 256
        %v1180 = vpop.permute.xlu0 %1179
        %v1181 = vlaneseq
        %v1182 = vshrl.u32 %v1181, 7
        %v1183 = vsub.s32 4, %v1182
        %v1184 = vrot.slane %v1151, %v1183
        %1186 = vbcast.lane.b32.xlu0 %v1184, 256
        %v1187 = vpop.permute.xlu0 %1186
        %v1188 = vlaneseq
        %v1189 = vshrl.u32 %v1188, 7
        %v1190 = vsub.s32 5, %v1189
        %v1191 = vrot.slane %v1151, %v1190
        %1193 = vbcast.lane.b32.xlu0 %v1191, 256
        %v1194 = vpop.permute.xlu0 %1193
        %v1195 = vlaneseq
        %v1196 = vshrl.u32 %v1195, 7
        %v1197 = vsub.s32 6, %v1196
        %v1198 = vrot.slane %v1151, %v1197
        %1200 = vbcast.lane.b32.xlu0 %v1198, 256
        %v1201 = vpop.permute.xlu0 %1200
        %v1202 = vlaneseq
        %v1203 = vshrl.u32 %v1202, 7
        %v1204 = vsub.s32 7, %v1203
        %v1205 = vrot.slane %v1151, %v1204
        %1207 = vbcast.lane.b32.xlu0 %v1205, 256
        %v1208 = vpop.permute.xlu0 %1207
        %v1209 = vlaneseq
        %v1210 = vshrl.u32 %v1209, 7
        %v1211 = vsub.s32 0, %v1210
        %v1212 = vrot.slane %v1152, %v1211
        %1214 = vbcast.lane.b32.xlu0 %v1212, 256
        %v1215 = vpop.permute.xlu0 %1214
        %v1216 = vlaneseq
        %v1217 = vshrl.u32 %v1216, 7
        %v1218 = vsub.s32 1, %v1217
        %v1219 = vrot.slane %v1152, %v1218
        %1221 = vbcast.lane.b32.xlu0 %v1219, 256
        %v1222 = vpop.permute.xlu0 %1221
        %v1223 = vlaneseq
        %v1224 = vshrl.u32 %v1223, 7
        %v1225 = vsub.s32 2, %v1224
        %v1226 = vrot.slane %v1152, %v1225
        %1228 = vbcast.lane.b32.xlu0 %v1226, 256
        %v1229 = vpop.permute.xlu0 %1228
        %v1230 = vlaneseq
        %v1231 = vshrl.u32 %v1230, 7
        %v1232 = vsub.s32 3, %v1231
        %v1233 = vrot.slane %v1152, %v1232
        %1235 = vbcast.lane.b32.xlu0 %v1233, 256
        %v1236 = vpop.permute.xlu0 %1235
        %v1237 = vlaneseq
        %v1238 = vshrl.u32 %v1237, 7
        %v1239 = vsub.s32 4, %v1238
        %v1240 = vrot.slane %v1152, %v1239
        %1242 = vbcast.lane.b32.xlu0 %v1240, 256
        %v1243 = vpop.permute.xlu0 %1242
        %v1244 = vlaneseq
        %v1245 = vshrl.u32 %v1244, 7
        %v1246 = vsub.s32 5, %v1245
        %v1247 = vrot.slane %v1152, %v1246
        %1249 = vbcast.lane.b32.xlu0 %v1247, 256
        %v1250 = vpop.permute.xlu0 %1249
        %v1251 = vlaneseq
        %v1252 = vshrl.u32 %v1251, 7
        %v1253 = vsub.s32 6, %v1252
        %v1254 = vrot.slane %v1152, %v1253
        %1256 = vbcast.lane.b32.xlu0 %v1254, 256
        %v1257 = vpop.permute.xlu0 %1256
        %v1258 = vlaneseq
        %v1259 = vshrl.u32 %v1258, 7
        %v1260 = vsub.s32 7, %v1259
        %v1261 = vrot.slane %v1152, %v1260
        %1263 = vbcast.lane.b32.xlu0 %v1261, 256
        %v1264 = vpop.permute.xlu0 %1263
        %v1265 = vld [vmem:[%s467] sm:$0xf]
        %v1266 = vld [vmem:[%s467 + $0x4] sm:$0xf]
        %v1267 = vld [vmem:[%s467 + $0x8] sm:$0xf]
        %v1268 = vld [vmem:[%s467 + $0xc] sm:$0xf]
        %v1269 = vld [vmem:[%s467 + $0x10] sm:$0xf]
        %v1270 = vld [vmem:[%s467 + $0x14] sm:$0xf]
        %v1271 = vld [vmem:[%s467 + $0x18] sm:$0xf]
        %v1272 = vld [vmem:[%s467 + $0x1c] sm:$0xf]
        %v1273 = vld [vmem:[%s467 + $0x20] sm:$0xf]
        %v1274 = vld [vmem:[%s467 + $0x24] sm:$0xf]
        %v1275 = vld [vmem:[%s467 + $0x28] sm:$0xf]
        %v1276 = vld [vmem:[%s467 + $0x2c] sm:$0xf]
        %v1277 = vld [vmem:[%s467 + $0x30] sm:$0xf]
        %v1278 = vld [vmem:[%s467 + $0x34] sm:$0xf]
        %v1279 = vld [vmem:[%s467 + $0x38] sm:$0xf]
        %v1280 = vld [vmem:[%s467 + $0x3c] sm:$0xf]
        %v1281 = vunpack.c.l.bf16 %v1265
        %v1282 = vunpack.c.l.bf16 %v1266
        %v1283 = vunpack.c.l.bf16 %v1267
        %v1284 = vunpack.c.l.bf16 %v1268
        %v1285 = vunpack.c.l.bf16 %v1269
        %v1286 = vunpack.c.l.bf16 %v1270
        %v1287 = vunpack.c.l.bf16 %v1271
        %v1288 = vunpack.c.l.bf16 %v1272
        %v1289 = vunpack.c.l.bf16 %v1273
        %v1290 = vunpack.c.l.bf16 %v1274
        %v1291 = vunpack.c.l.bf16 %v1275
        %v1292 = vunpack.c.l.bf16 %v1276
        %v1293 = vunpack.c.l.bf16 %v1277
        %v1294 = vunpack.c.l.bf16 %v1278
        %v1295 = vunpack.c.l.bf16 %v1279
        %v1296 = vunpack.c.l.bf16 %v1280
        %v1297 = vmul.f32 %v1281, %v1159
        %v1298 = vmul.f32 %v1282, %v1166
        %v1299 = vmul.f32 %v1283, %v1173
        %v1300 = vmul.f32 %v1284, %v1180
        %v1301 = vmul.f32 %v1285, %v1187
        %v1302 = vmul.f32 %v1286, %v1194
        %v1303 = vmul.f32 %v1287, %v1201
        %v1304 = vmul.f32 %v1288, %v1208
        %v1305 = vmul.f32 %v1289, %v1215
        %v1306 = vmul.f32 %v1290, %v1222
        %v1307 = vmul.f32 %v1291, %v1229
        %v1308 = vmul.f32 %v1292, %v1236
        %v1309 = vmul.f32 %v1293, %v1243
        %v1310 = vmul.f32 %v1294, %v1250
        %v1311 = vmul.f32 %v1295, %v1257
        %v1312 = vmul.f32 %v1296, %v1264
        %vm1313 = vcmask 260096
        %v1314 = vsel %vm1313, %v1297, 0.0
        %v1315 = vrot.slane %v1314, 4
        %v1316 = vadd.f32 %v1314, %v1315
        %v1317 = vrot.slane %v1316, 2
        %v1318 = vadd.f32 %v1316, %v1317
        %v1319 = vrot.slane %v1318, 1
        %v1320 = vadd.f32 %v1318, %v1319
        %v1321 = vsel %vm1313, %v1298, 0.0
        %v1322 = vrot.slane %v1321, 4
        %v1323 = vadd.f32 %v1321, %v1322
        %v1324 = vrot.slane %v1323, 2
        %v1325 = vadd.f32 %v1323, %v1324
        %v1326 = vrot.slane %v1325, 1
        %v1327 = vadd.f32 %v1325, %v1326
        %v1328 = vsel %vm1313, %v1299, 0.0
        %v1329 = vrot.slane %v1328, 4
        %v1330 = vadd.f32 %v1328, %v1329
        %v1331 = vrot.slane %v1330, 2
        %v1332 = vadd.f32 %v1330, %v1331
        %v1333 = vrot.slane %v1332, 1
        %v1334 = vadd.f32 %v1332, %v1333
        %v1335 = vsel %vm1313, %v1300, 0.0
        %v1336 = vrot.slane %v1335, 4
        %v1337 = vadd.f32 %v1335, %v1336
        %v1338 = vrot.slane %v1337, 2
        %v1339 = vadd.f32 %v1337, %v1338
        %v1340 = vrot.slane %v1339, 1
        %v1341 = vadd.f32 %v1339, %v1340
        %v1342 = vsel %vm1313, %v1301, 0.0
        %v1343 = vrot.slane %v1342, 4
        %v1344 = vadd.f32 %v1342, %v1343
        %v1345 = vrot.slane %v1344, 2
        %v1346 = vadd.f32 %v1344, %v1345
        %v1347 = vrot.slane %v1346, 1
        %v1348 = vadd.f32 %v1346, %v1347
        %v1349 = vsel %vm1313, %v1302, 0.0
        %v1350 = vrot.slane %v1349, 4
        %v1351 = vadd.f32 %v1349, %v1350
        %v1352 = vrot.slane %v1351, 2
        %v1353 = vadd.f32 %v1351, %v1352
        %v1354 = vrot.slane %v1353, 1
        %v1355 = vadd.f32 %v1353, %v1354
        %v1356 = vsel %vm1313, %v1303, 0.0
        %v1357 = vrot.slane %v1356, 4
        %v1358 = vadd.f32 %v1356, %v1357
        %v1359 = vrot.slane %v1358, 2
        %v1360 = vadd.f32 %v1358, %v1359
        %v1361 = vrot.slane %v1360, 1
        %v1362 = vadd.f32 %v1360, %v1361
        %v1363 = vsel %vm1313, %v1304, 0.0
        %v1364 = vrot.slane %v1363, 4
        %v1365 = vadd.f32 %v1363, %v1364
        %v1366 = vrot.slane %v1365, 2
        %v1367 = vadd.f32 %v1365, %v1366
        %v1368 = vrot.slane %v1367, 1
        %v1369 = vadd.f32 %v1367, %v1368
        %v1370 = vsel %vm1313, %v1305, 0.0
        %v1371 = vrot.slane %v1370, 4
        %v1372 = vadd.f32 %v1370, %v1371
        %v1373 = vrot.slane %v1372, 2
        %v1374 = vadd.f32 %v1372, %v1373
        %v1375 = vrot.slane %v1374, 1
        %v1376 = vadd.f32 %v1374, %v1375
        %v1377 = vsel %vm1313, %v1306, 0.0
        %v1378 = vrot.slane %v1377, 4
        %v1379 = vadd.f32 %v1377, %v1378
        %v1380 = vrot.slane %v1379, 2
        %v1381 = vadd.f32 %v1379, %v1380
        %v1382 = vrot.slane %v1381, 1
        %v1383 = vadd.f32 %v1381, %v1382
        %v1384 = vsel %vm1313, %v1307, 0.0
        %v1385 = vrot.slane %v1384, 4
        %v1386 = vadd.f32 %v1384, %v1385
        %v1387 = vrot.slane %v1386, 2
        %v1388 = vadd.f32 %v1386, %v1387
        %v1389 = vrot.slane %v1388, 1
        %v1390 = vadd.f32 %v1388, %v1389
        %v1391 = vsel %vm1313, %v1308, 0.0
        %v1392 = vrot.slane %v1391, 4
        %v1393 = vadd.f32 %v1391, %v1392
        %v1394 = vrot.slane %v1393, 2
        %v1395 = vadd.f32 %v1393, %v1394
        %v1396 = vrot.slane %v1395, 1
        %v1397 = vadd.f32 %v1395, %v1396
        %v1398 = vsel %vm1313, %v1309, 0.0
        %v1399 = vrot.slane %v1398, 4
        %v1400 = vadd.f32 %v1398, %v1399
        %v1401 = vrot.slane %v1400, 2
        %v1402 = vadd.f32 %v1400, %v1401
        %v1403 = vrot.slane %v1402, 1
        %v1404 = vadd.f32 %v1402, %v1403
        %v1405 = vsel %vm1313, %v1310, 0.0
        %v1406 = vrot.slane %v1405, 4
        %v1407 = vadd.f32 %v1405, %v1406
        %v1408 = vrot.slane %v1407, 2
        %v1409 = vadd.f32 %v1407, %v1408
        %v1410 = vrot.slane %v1409, 1
        %v1411 = vadd.f32 %v1409, %v1410
        %v1412 = vsel %vm1313, %v1311, 0.0
        %v1413 = vrot.slane %v1412, 4
        %v1414 = vadd.f32 %v1412, %v1413
        %v1415 = vrot.slane %v1414, 2
        %v1416 = vadd.f32 %v1414, %v1415
        %v1417 = vrot.slane %v1416, 1
        %v1418 = vadd.f32 %v1416, %v1417
        %v1419 = vsel %vm1313, %v1312, 0.0
        %v1420 = vrot.slane %v1419, 4
        %v1421 = vadd.f32 %v1419, %v1420
        %v1422 = vrot.slane %v1421, 2
        %v1423 = vadd.f32 %v1421, %v1422
        %v1424 = vrot.slane %v1423, 1
        %v1425 = vadd.f32 %v1423, %v1424
        %1428 = vrot.lane.b32.xlu0 %v1151, 1
        %v1429 = vpop.permute.xlu0 %1428
        %1430 = vrot.lane.b32.xlu0 %v1152, 1
        %v1431 = vpop.permute.xlu0 %1430
        %vm1434 = vcmask 7168
        %v1435 = vsel %vm1434, 0.0, %v1429
        %v1436 = vsel %vm1434, 0.0, %v1431
        %v1437 = vlaneseq
        %v1438 = vshrl.u32 %v1437, 7
        %v1439 = vsub.s32 0, %v1438
        %v1440 = vrot.slane %v1435, %v1439
        %1442 = vbcast.lane.b32.xlu0 %v1440, 256
        %v1443 = vpop.permute.xlu0 %1442
        %v1444 = vlaneseq
        %v1445 = vshrl.u32 %v1444, 7
        %v1446 = vsub.s32 1, %v1445
        %v1447 = vrot.slane %v1435, %v1446
        %1449 = vbcast.lane.b32.xlu0 %v1447, 256
        %v1450 = vpop.permute.xlu0 %1449
        %v1451 = vlaneseq
        %v1452 = vshrl.u32 %v1451, 7
        %v1453 = vsub.s32 2, %v1452
        %v1454 = vrot.slane %v1435, %v1453
        %1456 = vbcast.lane.b32.xlu0 %v1454, 256
        %v1457 = vpop.permute.xlu0 %1456
        %v1458 = vlaneseq
        %v1459 = vshrl.u32 %v1458, 7
        %v1460 = vsub.s32 3, %v1459
        %v1461 = vrot.slane %v1435, %v1460
        %1463 = vbcast.lane.b32.xlu0 %v1461, 256
        %v1464 = vpop.permute.xlu0 %1463
        %v1465 = vlaneseq
        %v1466 = vshrl.u32 %v1465, 7
        %v1467 = vsub.s32 4, %v1466
        %v1468 = vrot.slane %v1435, %v1467
        %1470 = vbcast.lane.b32.xlu0 %v1468, 256
        %v1471 = vpop.permute.xlu0 %1470
        %v1472 = vlaneseq
        %v1473 = vshrl.u32 %v1472, 7
        %v1474 = vsub.s32 5, %v1473
        %v1475 = vrot.slane %v1435, %v1474
        %1477 = vbcast.lane.b32.xlu0 %v1475, 256
        %v1478 = vpop.permute.xlu0 %1477
        %v1479 = vlaneseq
        %v1480 = vshrl.u32 %v1479, 7
        %v1481 = vsub.s32 6, %v1480
        %v1482 = vrot.slane %v1435, %v1481
        %1484 = vbcast.lane.b32.xlu0 %v1482, 256
        %v1485 = vpop.permute.xlu0 %1484
        %v1486 = vlaneseq
        %v1487 = vshrl.u32 %v1486, 7
        %v1488 = vsub.s32 7, %v1487
        %v1489 = vrot.slane %v1435, %v1488
        %1491 = vbcast.lane.b32.xlu0 %v1489, 256
        %v1492 = vpop.permute.xlu0 %1491
        %v1493 = vlaneseq
        %v1494 = vshrl.u32 %v1493, 7
        %v1495 = vsub.s32 0, %v1494
        %v1496 = vrot.slane %v1436, %v1495
        %1498 = vbcast.lane.b32.xlu0 %v1496, 256
        %v1499 = vpop.permute.xlu0 %1498
        %v1500 = vlaneseq
        %v1501 = vshrl.u32 %v1500, 7
        %v1502 = vsub.s32 1, %v1501
        %v1503 = vrot.slane %v1436, %v1502
        %1505 = vbcast.lane.b32.xlu0 %v1503, 256
        %v1506 = vpop.permute.xlu0 %1505
        %v1507 = vlaneseq
        %v1508 = vshrl.u32 %v1507, 7
        %v1509 = vsub.s32 2, %v1508
        %v1510 = vrot.slane %v1436, %v1509
        %1512 = vbcast.lane.b32.xlu0 %v1510, 256
        %v1513 = vpop.permute.xlu0 %1512
        %v1514 = vlaneseq
        %v1515 = vshrl.u32 %v1514, 7
        %v1516 = vsub.s32 3, %v1515
        %v1517 = vrot.slane %v1436, %v1516
        %1519 = vbcast.lane.b32.xlu0 %v1517, 256
        %v1520 = vpop.permute.xlu0 %1519
        %v1521 = vlaneseq
        %v1522 = vshrl.u32 %v1521, 7
        %v1523 = vsub.s32 4, %v1522
        %v1524 = vrot.slane %v1436, %v1523
        %1526 = vbcast.lane.b32.xlu0 %v1524, 256
        %v1527 = vpop.permute.xlu0 %1526
        %v1528 = vlaneseq
        %v1529 = vshrl.u32 %v1528, 7
        %v1530 = vsub.s32 5, %v1529
        %v1531 = vrot.slane %v1436, %v1530
        %1533 = vbcast.lane.b32.xlu0 %v1531, 256
        %v1534 = vpop.permute.xlu0 %1533
        %v1535 = vlaneseq
        %v1536 = vshrl.u32 %v1535, 7
        %v1537 = vsub.s32 6, %v1536
        %v1538 = vrot.slane %v1436, %v1537
        %1540 = vbcast.lane.b32.xlu0 %v1538, 256
        %v1541 = vpop.permute.xlu0 %1540
        %v1542 = vlaneseq
        %v1543 = vshrl.u32 %v1542, 7
        %v1544 = vsub.s32 7, %v1543
        %v1545 = vrot.slane %v1436, %v1544
        %1547 = vbcast.lane.b32.xlu0 %v1545, 256
        %v1548 = vpop.permute.xlu0 %1547
        %v1549 = vmul.f32 %v1118, %v1443
        %v1550 = vmul.f32 %v1119, %v1450
        %v1551 = vmul.f32 %v1120, %v1457
        %v1552 = vmul.f32 %v1121, %v1464
        %v1553 = vmul.f32 %v1122, %v1471
        %v1554 = vmul.f32 %v1123, %v1478
        %v1555 = vmul.f32 %v1124, %v1485
        %v1556 = vmul.f32 %v1125, %v1492
        %v1557 = vmul.f32 %v1126, %v1499
        %v1558 = vmul.f32 %v1127, %v1506
        %v1559 = vmul.f32 %v1128, %v1513
        %v1560 = vmul.f32 %v1129, %v1520
        %v1561 = vmul.f32 %v1130, %v1527
        %v1562 = vmul.f32 %v1131, %v1534
        %v1563 = vmul.f32 %v1132, %v1541
        %v1564 = vmul.f32 %v1133, %v1548
        %v1565 = vsel %vm878, %v1549, 0.0
        %v1566 = vrot.slane %v1565, 4
        %v1567 = vadd.f32 %v1565, %v1566
        %v1568 = vrot.slane %v1567, 2
        %v1569 = vadd.f32 %v1567, %v1568
        %v1570 = vrot.slane %v1569, 1
        %v1571 = vadd.f32 %v1569, %v1570
        %v1572 = vsel %vm878, %v1550, 0.0
        %v1573 = vrot.slane %v1572, 4
        %v1574 = vadd.f32 %v1572, %v1573
        %v1575 = vrot.slane %v1574, 2
        %v1576 = vadd.f32 %v1574, %v1575
        %v1577 = vrot.slane %v1576, 1
        %v1578 = vadd.f32 %v1576, %v1577
        %v1579 = vsel %vm878, %v1551, 0.0
        %v1580 = vrot.slane %v1579, 4
        %v1581 = vadd.f32 %v1579, %v1580
        %v1582 = vrot.slane %v1581, 2
        %v1583 = vadd.f32 %v1581, %v1582
        %v1584 = vrot.slane %v1583, 1
        %v1585 = vadd.f32 %v1583, %v1584
        %v1586 = vsel %vm878, %v1552, 0.0
        %v1587 = vrot.slane %v1586, 4
        %v1588 = vadd.f32 %v1586, %v1587
        %v1589 = vrot.slane %v1588, 2
        %v1590 = vadd.f32 %v1588, %v1589
        %v1591 = vrot.slane %v1590, 1
        %v1592 = vadd.f32 %v1590, %v1591
        %v1593 = vsel %vm878, %v1553, 0.0
        %v1594 = vrot.slane %v1593, 4
        %v1595 = vadd.f32 %v1593, %v1594
        %v1596 = vrot.slane %v1595, 2
        %v1597 = vadd.f32 %v1595, %v1596
        %v1598 = vrot.slane %v1597, 1
        %v1599 = vadd.f32 %v1597, %v1598
        %v1600 = vsel %vm878, %v1554, 0.0
        %v1601 = vrot.slane %v1600, 4
        %v1602 = vadd.f32 %v1600, %v1601
        %v1603 = vrot.slane %v1602, 2
        %v1604 = vadd.f32 %v1602, %v1603
        %v1605 = vrot.slane %v1604, 1
        %v1606 = vadd.f32 %v1604, %v1605
        %v1607 = vsel %vm878, %v1555, 0.0
        %v1608 = vrot.slane %v1607, 4
        %v1609 = vadd.f32 %v1607, %v1608
        %v1610 = vrot.slane %v1609, 2
        %v1611 = vadd.f32 %v1609, %v1610
        %v1612 = vrot.slane %v1611, 1
        %v1613 = vadd.f32 %v1611, %v1612
        %v1614 = vsel %vm878, %v1556, 0.0
        %v1615 = vrot.slane %v1614, 4
        %v1616 = vadd.f32 %v1614, %v1615
        %v1617 = vrot.slane %v1616, 2
        %v1618 = vadd.f32 %v1616, %v1617
        %v1619 = vrot.slane %v1618, 1
        %v1620 = vadd.f32 %v1618, %v1619
        %v1621 = vsel %vm878, %v1557, 0.0
        %v1622 = vrot.slane %v1621, 4
        %v1623 = vadd.f32 %v1621, %v1622
        %v1624 = vrot.slane %v1623, 2
        %v1625 = vadd.f32 %v1623, %v1624
        %v1626 = vrot.slane %v1625, 1
        %v1627 = vadd.f32 %v1625, %v1626
        %v1628 = vsel %vm878, %v1558, 0.0
        %v1629 = vrot.slane %v1628, 4
        %v1630 = vadd.f32 %v1628, %v1629
        %v1631 = vrot.slane %v1630, 2
        %v1632 = vadd.f32 %v1630, %v1631
        %v1633 = vrot.slane %v1632, 1
        %v1634 = vadd.f32 %v1632, %v1633
        %v1635 = vsel %vm878, %v1559, 0.0
        %v1636 = vrot.slane %v1635, 4
        %v1637 = vadd.f32 %v1635, %v1636
        %v1638 = vrot.slane %v1637, 2
        %v1639 = vadd.f32 %v1637, %v1638
        %v1640 = vrot.slane %v1639, 1
        %v1641 = vadd.f32 %v1639, %v1640
        %v1642 = vsel %vm878, %v1560, 0.0
        %v1643 = vrot.slane %v1642, 4
        %v1644 = vadd.f32 %v1642, %v1643
        %v1645 = vrot.slane %v1644, 2
        %v1646 = vadd.f32 %v1644, %v1645
        %v1647 = vrot.slane %v1646, 1
        %v1648 = vadd.f32 %v1646, %v1647
        %v1649 = vsel %vm878, %v1561, 0.0
        %v1650 = vrot.slane %v1649, 4
        %v1651 = vadd.f32 %v1649, %v1650
        %v1652 = vrot.slane %v1651, 2
        %v1653 = vadd.f32 %v1651, %v1652
        %v1654 = vrot.slane %v1653, 1
        %v1655 = vadd.f32 %v1653, %v1654
        %v1656 = vsel %vm878, %v1562, 0.0
        %v1657 = vrot.slane %v1656, 4
        %v1658 = vadd.f32 %v1656, %v1657
        %v1659 = vrot.slane %v1658, 2
        %v1660 = vadd.f32 %v1658, %v1659
        %v1661 = vrot.slane %v1660, 1
        %v1662 = vadd.f32 %v1660, %v1661
        %v1663 = vsel %vm878, %v1563, 0.0
        %v1664 = vrot.slane %v1663, 4
        %v1665 = vadd.f32 %v1663, %v1664
        %v1666 = vrot.slane %v1665, 2
        %v1667 = vadd.f32 %v1665, %v1666
        %v1668 = vrot.slane %v1667, 1
        %v1669 = vadd.f32 %v1667, %v1668
        %v1670 = vsel %vm878, %v1564, 0.0
        %v1671 = vrot.slane %v1670, 4
        %v1672 = vadd.f32 %v1670, %v1671
        %v1673 = vrot.slane %v1672, 2
        %v1674 = vadd.f32 %v1672, %v1673
        %v1675 = vrot.slane %v1674, 1
        %v1676 = vadd.f32 %v1674, %v1675
        %v1677 = vld [vmem:[%s449] sm:$0xf]
        %v1678 = vld [vmem:[%s449 + $0x4] sm:$0xf]
        %v1679 = vunpack.c.l.bf16 %v1677
        %v1680 = vunpack.c.l.bf16 %v1678
        %v1681 = vld [vmem:[%s455] sm:$0xf]
        %v1682 = vld [vmem:[%s455 + $0x4] sm:$0xf]
        %v1683 = vunpack.c.l.bf16 %v1681
        %v1684 = vunpack.c.l.bf16 %v1682
        %1687 = vrot.lane.b32.xlu0 %v1683, 32
        %v1688 = vpop.permute.xlu0 %1687
        %1689 = vrot.lane.b32.xlu0 %v1684, 32
        %v1690 = vpop.permute.xlu0 %1689
        %v1709 = vrot.slane %v1119, 7
        %vm1710 = vcmask 1041409
        %v1711 = vsel %vm1710, %v1709, %v1118
        %v1712 = vrot.slane %v1120, 6
        %vm1713 = vcmask 1042434
        %v1714 = vsel %vm1713, %v1712, %v1711
        %v1715 = vrot.slane %v1121, 5
        %vm1716 = vcmask 1043459
        %v1717 = vsel %vm1716, %v1715, %v1714
        %v1718 = vrot.slane %v1122, 4
        %vm1719 = vcmask 1044484
        %v1720 = vsel %vm1719, %v1718, %v1717
        %v1721 = vrot.slane %v1123, 3
        %vm1722 = vcmask 1045509
        %v1723 = vsel %vm1722, %v1721, %v1720
        %v1724 = vrot.slane %v1124, 2
        %vm1725 = vcmask 1046534
        %v1726 = vsel %vm1725, %v1724, %v1723
        %v1727 = vrot.slane %v1125, 1
        %vm1728 = vcmask 1047559
        %v1729 = vsel %vm1728, %v1727, %v1726
        %v1730 = vrot.slane %v1127, 7
        %v1731 = vsel %vm1710, %v1730, %v1126
        %v1732 = vrot.slane %v1128, 6
        %v1733 = vsel %vm1713, %v1732, %v1731
        %v1734 = vrot.slane %v1129, 5
        %v1735 = vsel %vm1716, %v1734, %v1733
        %v1736 = vrot.slane %v1130, 4
        %v1737 = vsel %vm1719, %v1736, %v1735
        %v1738 = vrot.slane %v1131, 3
        %v1739 = vsel %vm1722, %v1738, %v1737
        %v1740 = vrot.slane %v1132, 2
        %v1741 = vsel %vm1725, %v1740, %v1739
        %v1742 = vrot.slane %v1133, 1
        %v1743 = vsel %vm1728, %v1742, %v1741
        %1744 = vrot.lane.b32.xlu0 %v1729, 64
        %v1745 = vpop.permute.xlu0 %1744
        %1746 = vrot.lane.b32.xlu0 %v1743, 64
        %v1747 = vpop.permute.xlu0 %1746
        %v1766 = vsel %vm1710, %v1327, %v1320
        %v1767 = vsel %vm1713, %v1334, %v1766
        %v1768 = vsel %vm1716, %v1341, %v1767
        %v1769 = vsel %vm1719, %v1348, %v1768
        %v1770 = vsel %vm1722, %v1355, %v1769
        %v1771 = vsel %vm1725, %v1362, %v1770
        %v1772 = vsel %vm1728, %v1369, %v1771
        %v1773 = vsel %vm1710, %v1383, %v1376
        %v1774 = vsel %vm1713, %v1390, %v1773
        %v1775 = vsel %vm1716, %v1397, %v1774
        %v1776 = vsel %vm1719, %v1404, %v1775
        %v1777 = vsel %vm1722, %v1411, %v1776
        %v1778 = vsel %vm1725, %v1418, %v1777
        %v1779 = vsel %vm1728, %v1425, %v1778
        %1780 = vrot.lane.b32.xlu0 %v1772, 96
        %v1781 = vpop.permute.xlu0 %1780
        %1782 = vrot.lane.b32.xlu0 %v1779, 96
        %v1783 = vpop.permute.xlu0 %1782
        %v1802 = vsel %vm1710, %v1578, %v1571
        %v1803 = vsel %vm1713, %v1585, %v1802
        %v1804 = vsel %vm1716, %v1592, %v1803
        %v1805 = vsel %vm1719, %v1599, %v1804
        %v1806 = vsel %vm1722, %v1606, %v1805
        %v1807 = vsel %vm1725, %v1613, %v1806
        %v1808 = vsel %vm1728, %v1620, %v1807
        %v1809 = vsel %vm1710, %v1634, %v1627
        %v1810 = vsel %vm1713, %v1641, %v1809
        %v1811 = vsel %vm1716, %v1648, %v1810
        %v1812 = vsel %vm1719, %v1655, %v1811
        %v1813 = vsel %vm1722, %v1662, %v1812
        %v1814 = vsel %vm1725, %v1669, %v1813
        %v1815 = vsel %vm1728, %v1676, %v1814
        %v1818 = vsel %vm878, %v1679, %v1688
        %v1819 = vsel %vm878, %v1680, %v1690
        %v1820 = vsel %vm572, %v1818, %v1745
        %v1821 = vsel %vm572, %v1819, %v1747
        %vm1822 = vcmask 785408
        %v1823 = vsel %vm1822, %v1820, %v1781
        %v1824 = vsel %vm1822, %v1821, %v1783
        %1825 = vst [vmem:[%s444] sm:$0xff] %v1823
        %1826 = vst.msk [vmem:[%s444 + $0x8] sm:$0xff] %vm878, %v1808
        %1827 = vst [vmem:[%s444 + $0x10] sm:$0xff] %v1824
        %1828 = vst.msk [vmem:[%s444 + $0x18] sm:$0xff] %vm878, %v1815
        %s1829 = sand.u32 %s289, 1
        %s1830 = scalar_lea.sflag [#allocation3], %s1829
        %s1831 = sand.u32 %s289, 1
        %s1832 = smul.addr %s1831, 32
        %s1833 = scalar_lea.vmem [#allocation2], %s1832
        // Predicated region
        $region65: #{tpu_custom_call.1} parent=63 // pred_check
          %p1834 = pneg %p299
        $region66: #{tpu_custom_call.1} parent=63 // pred_check_branch
          %1836 = sbr.rel (%p1834) target = $region68
        $region67: #{tpu_custom_call.1} parent=63 // pred_region
          %s1837 = smul.u32 2, %s25
          %s1839 = ssub.s32 512, 512
          %1840 = vsyncadd %s1830, %s1839
          %s1841 = smul.addr %s1837, 2
          %s1842 = smul.addr %s1841, 128
          %s1843 = scalar_lea.hbm %s11, %s1842
          %s1844 = sshll.u32 %s1833, 4
          %s1845 = int_to_ptr.vmem [resolvable:$true] %s1844
          %1850 = dma.vmem_to_hbm [thread:$0]  %s1845, 512, %s1843, %s1830, 256, 256, 16
        $region68: #{tpu_custom_call.1} parent=63 // pred_fallthru
          _
      $region64: #{tpu_custom_call.1} parent=5 // pred_fallthru
        _
      %p1851 = scmp.le.s32.totalorder 2, %s20
      // Predicated region
      $region69: #{tpu_custom_call.1} parent=5 // pred_check
        %p1852 = pneg %p1851
      $region70: #{tpu_custom_call.1} parent=5 // pred_check_branch
        %1854 = sbr.rel (%p1852) target = $region72
      $region71: #{tpu_custom_call.1} parent=5 // pred_region
        %s1855 = ssub.s32 %s20, 2
        // Predicated region
        $region73: #{tpu_custom_call.1} parent=71 // pred_check
          %p1856 = pneg %p305
        $region74: #{tpu_custom_call.1} parent=71 // pred_check_branch
          %1858 = sbr.rel (%p1856) target = $region76
        $region75: #{tpu_custom_call.1} parent=71 // pred_region
          %s1859 = sand.u32 %s290, 1
          %s1860 = scalar_lea.sflag [#allocation3], %s1859
          %s1861 = sand.u32 %s290, 1
          %s1862 = smul.addr %s1861, 32
          %s1863 = scalar_lea.vmem [#allocation2], %s1862
          %1864 = dma.done %s1860, 512
        $region76: #{tpu_custom_call.1} parent=71 // pred_fallthru
          _
      $region72: #{tpu_custom_call.1} parent=5 // pred_fallthru
        _
    $region6: #{tpu_custom_call.1} parent=1 // loop_footer
      %s24 = sadd.s32 1, %s20
    $region7: #{tpu_custom_call.1} parent=1 // loop_footer_branch
      %19 = sbr.rel target = $region3
    $region8: #{tpu_custom_call.1} parent=1 // loop_exit
      _
    %1865 = vsyncpa [#allocation3], 1
    %s1866 = scalar_lea.sflag [#allocation3], 1
    %1867 = vsyncpa %s1866, 1

</llo_original>
